<compile_context>
chip_gen: v7x
topology: tpu7x:2x2x1
jax: 0.10.0
libtpu: 0.0.40
codegen_flags: <defaults>
</compile_context>

<pallas_src>
import functools

import jax
import jax.numpy as jnp
from jax.experimental import pallas as pl
from jax.experimental.pallas import tpu as pltpu

H1 = 64   # lstm1 hidden size
H2 = 32   # lstm2 hidden size


def _lstm_classifier_kernel(x_ref,      # (T*B, 1)      time-major input rows, f32
                            wih1_ref,   # (1,  4*H1)    lstm1 W_ih^T  [i,f,o,g], f32
                            whh1_ref,   # (H1, 4*H1)    lstm1 W_hh^T  [i,f,o,g], bf16
                            b1_ref,     # (1,  4*H1)    lstm1 b_ih + b_hh, f32
                            wih2_ref,   # (H1, 4*H2)    lstm2 W_ih^T  [i,f,o,g], bf16
                            whh2_ref,   # (H2, 4*H2)    lstm2 W_hh^T  [i,f,o,g], bf16
                            b2_ref,     # (1,  4*H2)    lstm2 b_ih + b_hh, f32
                            wfc_ref,    # (1,  H2)      fc weight row, f32
                            bfc_ref,    # (1,  1)       fc bias, f32
                            out_ref):   # (B,  1)       sigmoid(logits), f32
    B = out_ref.shape[0]
    T = x_ref.shape[0] // B

    whh1 = whh1_ref[...]                                  # bf16 MXU operands
    wih2 = wih2_ref[...]
    whh2 = whh2_ref[...]

    # Hoisted layer-1 input projection + bias (input_size == 1 -> broadcasted
    # multiply).  One (T*B, 4*H1) VPU op instead of T ops on the serial chain.
    xw1 = x_ref[...] * wih1_ref[...] + b1_ref[...]        # (T*B, 4*H1) f32
    # Broadcast b2 once (JAX does not CSE broadcast_in_dim inside loops).
    b2b = jnp.broadcast_to(b2_ref[...], (B, 4 * H2))      # (B, 4*H2) f32

    h1 = jnp.zeros((B, H1), jnp.float32)
    c1 = jnp.zeros((B, H1), jnp.float32)
    h2 = jnp.zeros((B, H2), jnp.float32)
    c2 = jnp.zeros((B, H2), jnp.float32)

    def lstm_cell(gates, c_prev, H):
        # Gate columns pre-permuted to [i, f, o, g]: one sigmoid over the first
        # 3H lanes, one tanh over the last H lanes.
        sfo = jax.nn.sigmoid(gates[:, :3 * H])
        g = jnp.tanh(gates[:, 3 * H:])
        i = sfo[:, :H]
        f = sfo[:, H:2 * H]
        o = sfo[:, 2 * H:]
        c = f * c_prev + i * g
        h = o * jnp.tanh(c)
        return h, c                                       # f32 carries

    # Static unroll over the small, statically shaped sequence (T=8); the two
    # stacked LSTMs are fused per timestep (dropout between them is identity).
    # For large T, switch to lax.fori_loop carrying (h1, c1, h2, c2).
    for t in range(T):
        g1 = xw1[t * B:(t + 1) * B]                       # static, sublane-aligned
        if t > 0:                                         # skip zero-state matmul
            g1 = g1 + jnp.dot(h1.astype(jnp.bfloat16), whh1,
                              preferred_element_type=jnp.float32)
        h1, c1 = lstm_cell(g1, c1, H1)

        g2 = jnp.dot(h1.astype(jnp.bfloat16), wih2,
                     preferred_element_type=jnp.float32) + b2b
        if t > 0:                                         # skip zero-state matmul
            g2 = g2 + jnp.dot(h2.astype(jnp.bfloat16), whh2,
                              preferred_element_type=jnp.float32)
        h2, c2 = lstm_cell(g2, c2, H2)

    # fc (32 -> 1): an N=1 matmul wastes the MXU right before the only store;
    # VPU multiply + cross-lane reduce instead.
    logits = jnp.sum(h2 * wfc_ref[...], axis=-1, keepdims=True) + bfc_ref[...]
    out_ref[...] = jax.nn.sigmoid(logits)


@jax.jit
def lstm_classifier_forward(x, params):
    """x: (B, T, 1) float32, batch_first like the PyTorch module."""
    B, T, _ = x.shape
    # Pad the batch to a multiple of 8 rows (f32 sublane count): the hardware
    # pays for a full (8,128) tile anyway and aligned rows avoid masked stores.
    B_pad = max(8, ((B + 7) // 8) * 8)
    x = x.astype(jnp.float32)
    if B_pad != B:
        x = jnp.pad(x, ((0, B_pad - B), (0, 0), (0, 0)))
    # time-major, flattened to a 2-D slab so every in-kernel op is rank-2.
    x_tm = jnp.transpose(x, (1, 0, 2)).reshape(T * B_pad, 1)

    # Single block, fully VMEM-resident (footprint << VMEM on v5e/v6e/v7x), so
    # no grid / tiling.  For production batch sizes, add a batch-tile grid axis
    # with dimension_semantics=("parallel",); at B=2 that is moot.
    vmem = pl.BlockSpec(memory_space=pltpu.MemorySpace.VMEM)
    out = pl.pallas_call(
        _lstm_classifier_kernel,
        out_shape=jax.ShapeDtypeStruct((B_pad, 1), jnp.float32),
        in_specs=[vmem] * 9,
        out_specs=vmem,
    )(x_tm,
      params["wih1"], params["whh1"], params["b1"],
      params["wih2"], params["whh2"], params["b2"],
      params["wfc"], params["bfc"])
    # matches torch: out.squeeze() on a (B, 1) tensor -> (B,)
    return jnp.squeeze(out[:B])


def _permute_gates(w, axis):
    """PyTorch gate order [i, f, g, o] -> kernel order [i, f, o, g]."""
    i, f, g, o = jnp.split(w, 4, axis=axis)
    return jnp.concatenate([i, f, o, g], axis=axis)


def init_params(key):
    """Deterministic init mimicking PyTorch's U(-1/sqrt(H), 1/sqrt(H)).

    Returns (kernel_params, raw_params):
      raw_params    — PyTorch layout ([i,f,g,o], (4H, in) weights) for the
                      pure-JAX reference.
      kernel_params — transposed, gate-permuted to [i,f,o,g], biases pre-added,
                      MXU operands pre-cast to bf16.
    """
    ks = jax.random.split(key, 10)
    s1 = 1.0 / jnp.sqrt(jnp.float32(H1))
    s2 = 1.0 / jnp.sqrt(jnp.float32(H2))

    def u(k, shape, s):
        return jax.random.uniform(k, shape, jnp.float32, -s, s)

    raw = {
        "w_ih1": u(ks[0], (4 * H1, 1), s1),
        "w_hh1": u(ks[1], (4 * H1, H1), s1),
        "b_ih1": u(ks[2], (4 * H1,), s1),
        "b_hh1": u(ks[3], (4 * H1,), s1),
        "w_ih2": u(ks[4], (4 * H2, H1), s2),
        "w_hh2": u(ks[5], (4 * H2, H2), s2),
        "b_ih2": u(ks[6], (4 * H2,), s2),
        "b_hh2": u(ks[7], (4 * H2,), s2),
        "w_fc":  u(ks[8], (1, H2), s2),
        "b_fc":  u(ks[9], (1,), s2),
    }

    kernel_params = {
        "wih1": _permute_gates(raw["w_ih1"].T, axis=1),                        # (1, 256)  f32
        "whh1": _permute_gates(raw["w_hh1"].T, axis=1).astype(jnp.bfloat16),   # (64, 256) bf16
        "b1":   _permute_gates((raw["b_ih1"] + raw["b_hh1"]).reshape(1, -1), axis=1),
        "wih2": _permute_gates(raw["w_ih2"].T, axis=1).astype(jnp.bfloat16),   # (64, 128) bf16
        "whh2": _permute_gates(raw["w_hh2"].T, axis=1).astype(jnp.bfloat16),   # (32, 128) bf16
        "b2":   _permute_gates((raw["b_ih2"] + raw["b_hh2"]).reshape(1, -1), axis=1),
        "wfc":  raw["w_fc"],                                                   # (1, 32)   f32
        "bfc":  raw["b_fc"].reshape(1, 1),                                     # (1, 1)    f32
    }
    return kernel_params, raw


def _reference_forward(x, rp):
    """Pure-JAX f32 reference with PyTorch layout & gate order [i, f, g, o]."""
    B, T, _ = x.shape

    def cell(x_t, h, c, w_ih, w_hh, b_ih, b_hh, H):
        gates = x_t @ w_ih.T + h @ w_hh.T + b_ih + b_hh
        i = jax.nn.sigmoid(gates[:, :H])
        f = jax.nn.sigmoid(gates[:, H:2 * H])
        g = jnp.tanh(gates[:, 2 * H:3 * H])
        o = jax.nn.sigmoid(gates[:, 3 * H:])
        c = f * c + i * g
        return o * jnp.tanh(c), c

    h1 = jnp.zeros((B, H1)); c1 = jnp.zeros((B, H1))
    h2 = jnp.zeros((B, H2)); c2 = jnp.zeros((B, H2))
    for t in range(T):
        x_t = x[:, t, :]
        h1, c1 = cell(x_t, h1, c1, rp["w_ih1"], rp["w_hh1"],
                      rp["b_ih1"], rp["b_hh1"], H1)
        h2, c2 = cell(h1, h2, c2, rp["w_ih2"], rp["w_hh2"],
                      rp["b_ih2"], rp["b_hh2"], H2)
    logits = h2 @ rp["w_fc"].T + rp["b_fc"]
    return jnp.squeeze(jax.nn.sigmoid(logits))


if __name__ == "__main__":
    key = jax.random.PRNGKey(0)
    k_x, k_p = jax.random.split(key)

    B, T = 2, 8                       # small batch, sequence_length = 8
    x = jax.random.normal(k_x, (B, T, 1), jnp.float32)
    params, raw = init_params(k_p)

    out = lstm_classifier_forward(x, params)
    out = jax.block_until_ready(out)

    ref = _reference_forward(x, raw)
    assert out.shape == (B,), out.shape
    # bf16 MXU operands (f32 accumulation & carries) vs the pure-f32 reference
    # give small numerical drift; tolerance loosened accordingly.
    assert jnp.allclose(out, ref, atol=2e-2, rtol=2e-2), (out, ref)

    print("KERNEL_OK")
</pallas_src>

<mosaic_0001>
module attributes {stable_mosaic.version = 11 : i64} {
  func.func @_lstm_classifier_kernel(%arg0: memref<64x1xf32, #tpu.memory_space<vmem>>, %arg1: memref<1x256xf32, #tpu.memory_space<vmem>>, %arg2: memref<64x256xbf16, #tpu.memory_space<vmem>>, %arg3: memref<1x256xf32, #tpu.memory_space<vmem>>, %arg4: memref<64x128xbf16, #tpu.memory_space<vmem>>, %arg5: memref<32x128xbf16, #tpu.memory_space<vmem>>, %arg6: memref<1x128xf32, #tpu.memory_space<vmem>>, %arg7: memref<1x32xf32, #tpu.memory_space<vmem>>, %arg8: memref<1x1xf32, #tpu.memory_space<vmem>>, %arg9: memref<8x1xf32, #tpu.memory_space<vmem>>) attributes {dimension_semantics = [], scalar_prefetch = 0 : i64, scratch_operands = 0 : i64, tpu.core_type = #tpu.core_type<tc>} {
    %c0 = arith.constant 0 : index
    %c0_0 = arith.constant 0 : index
    %0 = vector.load %arg2[%c0, %c0_0] : memref<64x256xbf16, #tpu.memory_space<vmem>>, vector<64x256xbf16>
    %c0_1 = arith.constant 0 : index
    %c0_2 = arith.constant 0 : index
    %1 = vector.load %arg4[%c0_1, %c0_2] : memref<64x128xbf16, #tpu.memory_space<vmem>>, vector<64x128xbf16>
    %c0_3 = arith.constant 0 : index
    %c0_4 = arith.constant 0 : index
    %2 = vector.load %arg5[%c0_3, %c0_4] : memref<32x128xbf16, #tpu.memory_space<vmem>>, vector<32x128xbf16>
    %c0_5 = arith.constant 0 : index
    %c0_6 = arith.constant 0 : index
    %3 = vector.load %arg0[%c0_5, %c0_6] : memref<64x1xf32, #tpu.memory_space<vmem>>, vector<64x1xf32>
    %c0_7 = arith.constant 0 : index
    %c0_8 = arith.constant 0 : index
    %4 = vector.load %arg1[%c0_7, %c0_8] : memref<1x256xf32, #tpu.memory_space<vmem>>, vector<1x256xf32>
    %5 = vector.broadcast %3 : vector<64x1xf32> to vector<64x256xf32>
    %6 = vector.broadcast %4 : vector<1x256xf32> to vector<64x256xf32>
    %7 = arith.mulf %5, %6 : vector<64x256xf32>
    %c0_9 = arith.constant 0 : index
    %c0_10 = arith.constant 0 : index
    %8 = vector.load %arg3[%c0_9, %c0_10] : memref<1x256xf32, #tpu.memory_space<vmem>>, vector<1x256xf32>
    %9 = vector.broadcast %8 : vector<1x256xf32> to vector<64x256xf32>
    %10 = arith.addf %7, %9 : vector<64x256xf32>
    %c0_11 = arith.constant 0 : index
    %c0_12 = arith.constant 0 : index
    %11 = vector.load %arg6[%c0_11, %c0_12] : memref<1x128xf32, #tpu.memory_space<vmem>>, vector<1x128xf32>
    %12 = vector.shape_cast %11 : vector<1x128xf32> to vector<1x128xf32>
    %13 = vector.broadcast %12 : vector<1x128xf32> to vector<8x128xf32>
    %cst = arith.constant 0.000000e+00 : f32
    %14 = vector.broadcast %cst : f32 to vector<8x64xf32>
    %cst_13 = arith.constant 0.000000e+00 : f32
    %15 = vector.broadcast %cst_13 : f32 to vector<8x32xf32>
    %16 = vector.extract_strided_slice %10 {offsets = [0, 0], sizes = [8, 256], strides = [1, 1]} : vector<64x256xf32> to vector<8x256xf32>
    %17 = vector.extract_strided_slice %16 {offsets = [0, 0], sizes = [8, 192], strides = [1, 1]} : vector<8x256xf32> to vector<8x192xf32>
    %18 = arith.negf %17 : vector<8x192xf32>
    %19 = math.exp %18 : vector<8x192xf32>
    %cst_14 = arith.constant 1.000000e+00 : f32
    %20 = vector.broadcast %cst_14 : f32 to vector<8x192xf32>
    %21 = arith.addf %20, %19 : vector<8x192xf32>
    %22 = arith.divf %20, %21 : vector<8x192xf32>
    %23 = vector.extract_strided_slice %16 {offsets = [0, 192], sizes = [8, 64], strides = [1, 1]} : vector<8x256xf32> to vector<8x64xf32>
    %24 = math.tanh %23 : vector<8x64xf32>
    %25 = vector.extract_strided_slice %22 {offsets = [0, 0], sizes = [8, 64], strides = [1, 1]} : vector<8x192xf32> to vector<8x64xf32>
    %26 = vector.extract_strided_slice %22 {offsets = [0, 64], sizes = [8, 64], strides = [1, 1]} : vector<8x192xf32> to vector<8x64xf32>
    %27 = vector.extract_strided_slice %22 {offsets = [0, 128], sizes = [8, 64], strides = [1, 1]} : vector<8x192xf32> to vector<8x64xf32>
    %28 = arith.mulf %26, %14 : vector<8x64xf32>
    %29 = arith.mulf %25, %24 : vector<8x64xf32>
    %30 = arith.addf %28, %29 : vector<8x64xf32>
    %31 = math.tanh %30 : vector<8x64xf32>
    %32 = arith.mulf %27, %31 : vector<8x64xf32>
    %33 = arith.truncf %32 : vector<8x64xf32> to vector<8x64xbf16>
    %cst_15 = arith.constant dense<0.000000e+00> : vector<8x128xf32>
    %34 = tpu.matmul %33, %1, %cst_15 {dimension_numbers = #tpu.dot_dimension_numbers<[1], [0], [0], [1], [0, 0, 1, 1], [], []>} : vector<8x64xbf16>, vector<64x128xbf16>, vector<8x128xf32> -> vector<8x128xf32>
    %35 = arith.addf %34, %13 : vector<8x128xf32>
    %36 = vector.extract_strided_slice %35 {offsets = [0, 0], sizes = [8, 96], strides = [1, 1]} : vector<8x128xf32> to vector<8x96xf32>
    %37 = arith.negf %36 : vector<8x96xf32>
    %38 = math.exp %37 : vector<8x96xf32>
    %cst_16 = arith.constant 1.000000e+00 : f32
    %39 = vector.broadcast %cst_16 : f32 to vector<8x96xf32>
    %40 = arith.addf %39, %38 : vector<8x96xf32>
    %41 = arith.divf %39, %40 : vector<8x96xf32>
    %42 = vector.extract_strided_slice %35 {offsets = [0, 96], sizes = [8, 32], strides = [1, 1]} : vector<8x128xf32> to vector<8x32xf32>
    %43 = math.tanh %42 : vector<8x32xf32>
    %44 = vector.extract_strided_slice %41 {offsets = [0, 0], sizes = [8, 32], strides = [1, 1]} : vector<8x96xf32> to vector<8x32xf32>
    %45 = vector.extract_strided_slice %41 {offsets = [0, 32], sizes = [8, 32], strides = [1, 1]} : vector<8x96xf32> to vector<8x32xf32>
    %46 = vector.extract_strided_slice %41 {offsets = [0, 64], sizes = [8, 32], strides = [1, 1]} : vector<8x96xf32> to vector<8x32xf32>
    %47 = arith.mulf %45, %15 : vector<8x32xf32>
    %48 = arith.mulf %44, %43 : vector<8x32xf32>
    %49 = arith.addf %47, %48 : vector<8x32xf32>
    %50 = math.tanh %49 : vector<8x32xf32>
    %51 = arith.mulf %46, %50 : vector<8x32xf32>
    %52 = vector.extract_strided_slice %10 {offsets = [8, 0], sizes = [8, 256], strides = [1, 1]} : vector<64x256xf32> to vector<8x256xf32>
    %53 = arith.truncf %32 : vector<8x64xf32> to vector<8x64xbf16>
    %cst_17 = arith.constant dense<0.000000e+00> : vector<8x256xf32>
    %54 = tpu.matmul %53, %0, %cst_17 {dimension_numbers = #tpu.dot_dimension_numbers<[1], [0], [0], [1], [0, 0, 1, 1], [], []>} : vector<8x64xbf16>, vector<64x256xbf16>, vector<8x256xf32> -> vector<8x256xf32>
    %55 = arith.addf %52, %54 : vector<8x256xf32>
    %56 = vector.extract_strided_slice %55 {offsets = [0, 0], sizes = [8, 192], strides = [1, 1]} : vector<8x256xf32> to vector<8x192xf32>
    %57 = arith.negf %56 : vector<8x192xf32>
    %58 = math.exp %57 : vector<8x192xf32>
    %cst_18 = arith.constant 1.000000e+00 : f32
    %59 = vector.broadcast %cst_18 : f32 to vector<8x192xf32>
    %60 = arith.addf %59, %58 : vector<8x192xf32>
    %61 = arith.divf %59, %60 : vector<8x192xf32>
    %62 = vector.extract_strided_slice %55 {offsets = [0, 192], sizes = [8, 64], strides = [1, 1]} : vector<8x256xf32> to vector<8x64xf32>
    %63 = math.tanh %62 : vector<8x64xf32>
    %64 = vector.extract_strided_slice %61 {offsets = [0, 0], sizes = [8, 64], strides = [1, 1]} : vector<8x192xf32> to vector<8x64xf32>
    %65 = vector.extract_strided_slice %61 {offsets = [0, 64], sizes = [8, 64], strides = [1, 1]} : vector<8x192xf32> to vector<8x64xf32>
    %66 = vector.extract_strided_slice %61 {offsets = [0, 128], sizes = [8, 64], strides = [1, 1]} : vector<8x192xf32> to vector<8x64xf32>
    %67 = arith.mulf %65, %30 : vector<8x64xf32>
    %68 = arith.mulf %64, %63 : vector<8x64xf32>
    %69 = arith.addf %67, %68 : vector<8x64xf32>
    %70 = math.tanh %69 : vector<8x64xf32>
    %71 = arith.mulf %66, %70 : vector<8x64xf32>
    %72 = arith.truncf %71 : vector<8x64xf32> to vector<8x64xbf16>
    %cst_19 = arith.constant dense<0.000000e+00> : vector<8x128xf32>
    %73 = tpu.matmul %72, %1, %cst_19 {dimension_numbers = #tpu.dot_dimension_numbers<[1], [0], [0], [1], [0, 0, 1, 1], [], []>} : vector<8x64xbf16>, vector<64x128xbf16>, vector<8x128xf32> -> vector<8x128xf32>
    %74 = arith.addf %73, %13 : vector<8x128xf32>
    %75 = arith.truncf %51 : vector<8x32xf32> to vector<8x32xbf16>
    %cst_20 = arith.constant dense<0.000000e+00> : vector<8x128xf32>
    %76 = tpu.matmul %75, %2, %cst_20 {dimension_numbers = #tpu.dot_dimension_numbers<[1], [0], [0], [1], [0, 0, 1, 1], [], []>} : vector<8x32xbf16>, vector<32x128xbf16>, vector<8x128xf32> -> vector<8x128xf32>
    %77 = arith.addf %74, %76 : vector<8x128xf32>
    %78 = vector.extract_strided_slice %77 {offsets = [0, 0], sizes = [8, 96], strides = [1, 1]} : vector<8x128xf32> to vector<8x96xf32>
    %79 = arith.negf %78 : vector<8x96xf32>
    %80 = math.exp %79 : vector<8x96xf32>
    %cst_21 = arith.constant 1.000000e+00 : f32
    %81 = vector.broadcast %cst_21 : f32 to vector<8x96xf32>
    %82 = arith.addf %81, %80 : vector<8x96xf32>
    %83 = arith.divf %81, %82 : vector<8x96xf32>
    %84 = vector.extract_strided_slice %77 {offsets = [0, 96], sizes = [8, 32], strides = [1, 1]} : vector<8x128xf32> to vector<8x32xf32>
    %85 = math.tanh %84 : vector<8x32xf32>
    %86 = vector.extract_strided_slice %83 {offsets = [0, 0], sizes = [8, 32], strides = [1, 1]} : vector<8x96xf32> to vector<8x32xf32>
    %87 = vector.extract_strided_slice %83 {offsets = [0, 32], sizes = [8, 32], strides = [1, 1]} : vector<8x96xf32> to vector<8x32xf32>
    %88 = vector.extract_strided_slice %83 {offsets = [0, 64], sizes = [8, 32], strides = [1, 1]} : vector<8x96xf32> to vector<8x32xf32>
    %89 = arith.mulf %87, %49 : vector<8x32xf32>
    %90 = arith.mulf %86, %85 : vector<8x32xf32>
    %91 = arith.addf %89, %90 : vector<8x32xf32>
    %92 = math.tanh %91 : vector<8x32xf32>
    %93 = arith.mulf %88, %92 : vector<8x32xf32>
    %94 = vector.extract_strided_slice %10 {offsets = [16, 0], sizes = [8, 256], strides = [1, 1]} : vector<64x256xf32> to vector<8x256xf32>
    %95 = arith.truncf %71 : vector<8x64xf32> to vector<8x64xbf16>
    %cst_22 = arith.constant dense<0.000000e+00> : vector<8x256xf32>
    %96 = tpu.matmul %95, %0, %cst_22 {dimension_numbers = #tpu.dot_dimension_numbers<[1], [0], [0], [1], [0, 0, 1, 1], [], []>} : vector<8x64xbf16>, vector<64x256xbf16>, vector<8x256xf32> -> vector<8x256xf32>
    %97 = arith.addf %94, %96 : vector<8x256xf32>
    %98 = vector.extract_strided_slice %97 {offsets = [0, 0], sizes = [8, 192], strides = [1, 1]} : vector<8x256xf32> to vector<8x192xf32>
    %99 = arith.negf %98 : vector<8x192xf32>
    %100 = math.exp %99 : vector<8x192xf32>
    %cst_23 = arith.constant 1.000000e+00 : f32
    %101 = vector.broadcast %cst_23 : f32 to vector<8x192xf32>
    %102 = arith.addf %101, %100 : vector<8x192xf32>
    %103 = arith.divf %101, %102 : vector<8x192xf32>
    %104 = vector.extract_strided_slice %97 {offsets = [0, 192], sizes = [8, 64], strides = [1, 1]} : vector<8x256xf32> to vector<8x64xf32>
    %105 = math.tanh %104 : vector<8x64xf32>
    %106 = vector.extract_strided_slice %103 {offsets = [0, 0], sizes = [8, 64], strides = [1, 1]} : vector<8x192xf32> to vector<8x64xf32>
    %107 = vector.extract_strided_slice %103 {offsets = [0, 64], sizes = [8, 64], strides = [1, 1]} : vector<8x192xf32> to vector<8x64xf32>
    %108 = vector.extract_strided_slice %103 {offsets = [0, 128], sizes = [8, 64], strides = [1, 1]} : vector<8x192xf32> to vector<8x64xf32>
    %109 = arith.mulf %107, %69 : vector<8x64xf32>
    %110 = arith.mulf %106, %105 : vector<8x64xf32>
    %111 = arith.addf %109, %110 : vector<8x64xf32>
    %112 = math.tanh %111 : vector<8x64xf32>
    %113 = arith.mulf %108, %112 : vector<8x64xf32>
    %114 = arith.truncf %113 : vector<8x64xf32> to vector<8x64xbf16>
    %cst_24 = arith.constant dense<0.000000e+00> : vector<8x128xf32>
    %115 = tpu.matmul %114, %1, %cst_24 {dimension_numbers = #tpu.dot_dimension_numbers<[1], [0], [0], [1], [0, 0, 1, 1], [], []>} : vector<8x64xbf16>, vector<64x128xbf16>, vector<8x128xf32> -> vector<8x128xf32>
    %116 = arith.addf %115, %13 : vector<8x128xf32>
    %117 = arith.truncf %93 : vector<8x32xf32> to vector<8x32xbf16>
    %cst_25 = arith.constant dense<0.000000e+00> : vector<8x128xf32>
    %118 = tpu.matmul %117, %2, %cst_25 {dimension_numbers = #tpu.dot_dimension_numbers<[1], [0], [0], [1], [0, 0, 1, 1], [], []>} : vector<8x32xbf16>, vector<32x128xbf16>, vector<8x128xf32> -> vector<8x128xf32>
    %119 = arith.addf %116, %118 : vector<8x128xf32>
    %120 = vector.extract_strided_slice %119 {offsets = [0, 0], sizes = [8, 96], strides = [1, 1]} : vector<8x128xf32> to vector<8x96xf32>
    %121 = arith.negf %120 : vector<8x96xf32>
    %122 = math.exp %121 : vector<8x96xf32>
    %cst_26 = arith.constant 1.000000e+00 : f32
    %123 = vector.broadcast %cst_26 : f32 to vector<8x96xf32>
    %124 = arith.addf %123, %122 : vector<8x96xf32>
    %125 = arith.divf %123, %124 : vector<8x96xf32>
    %126 = vector.extract_strided_slice %119 {offsets = [0, 96], sizes = [8, 32], strides = [1, 1]} : vector<8x128xf32> to vector<8x32xf32>
    %127 = math.tanh %126 : vector<8x32xf32>
    %128 = vector.extract_strided_slice %125 {offsets = [0, 0], sizes = [8, 32], strides = [1, 1]} : vector<8x96xf32> to vector<8x32xf32>
    %129 = vector.extract_strided_slice %125 {offsets = [0, 32], sizes = [8, 32], strides = [1, 1]} : vector<8x96xf32> to vector<8x32xf32>
    %130 = vector.extract_strided_slice %125 {offsets = [0, 64], sizes = [8, 32], strides = [1, 1]} : vector<8x96xf32> to vector<8x32xf32>
    %131 = arith.mulf %129, %91 : vector<8x32xf32>
    %132 = arith.mulf %128, %127 : vector<8x32xf32>
    %133 = arith.addf %131, %132 : vector<8x32xf32>
    %134 = math.tanh %133 : vector<8x32xf32>
    %135 = arith.mulf %130, %134 : vector<8x32xf32>
    %136 = vector.extract_strided_slice %10 {offsets = [24, 0], sizes = [8, 256], strides = [1, 1]} : vector<64x256xf32> to vector<8x256xf32>
    %137 = arith.truncf %113 : vector<8x64xf32> to vector<8x64xbf16>
    %cst_27 = arith.constant dense<0.000000e+00> : vector<8x256xf32>
    %138 = tpu.matmul %137, %0, %cst_27 {dimension_numbers = #tpu.dot_dimension_numbers<[1], [0], [0], [1], [0, 0, 1, 1], [], []>} : vector<8x64xbf16>, vector<64x256xbf16>, vector<8x256xf32> -> vector<8x256xf32>
    %139 = arith.addf %136, %138 : vector<8x256xf32>
    %140 = vector.extract_strided_slice %139 {offsets = [0, 0], sizes = [8, 192], strides = [1, 1]} : vector<8x256xf32> to vector<8x192xf32>
    %141 = arith.negf %140 : vector<8x192xf32>
    %142 = math.exp %141 : vector<8x192xf32>
    %cst_28 = arith.constant 1.000000e+00 : f32
    %143 = vector.broadcast %cst_28 : f32 to vector<8x192xf32>
    %144 = arith.addf %143, %142 : vector<8x192xf32>
    %145 = arith.divf %143, %144 : vector<8x192xf32>
    %146 = vector.extract_strided_slice %139 {offsets = [0, 192], sizes = [8, 64], strides = [1, 1]} : vector<8x256xf32> to vector<8x64xf32>
    %147 = math.tanh %146 : vector<8x64xf32>
    %148 = vector.extract_strided_slice %145 {offsets = [0, 0], sizes = [8, 64], strides = [1, 1]} : vector<8x192xf32> to vector<8x64xf32>
    %149 = vector.extract_strided_slice %145 {offsets = [0, 64], sizes = [8, 64], strides = [1, 1]} : vector<8x192xf32> to vector<8x64xf32>
    %150 = vector.extract_strided_slice %145 {offsets = [0, 128], sizes = [8, 64], strides = [1, 1]} : vector<8x192xf32> to vector<8x64xf32>
    %151 = arith.mulf %149, %111 : vector<8x64xf32>
    %152 = arith.mulf %148, %147 : vector<8x64xf32>
    %153 = arith.addf %151, %152 : vector<8x64xf32>
    %154 = math.tanh %153 : vector<8x64xf32>
    %155 = arith.mulf %150, %154 : vector<8x64xf32>
    %156 = arith.truncf %155 : vector<8x64xf32> to vector<8x64xbf16>
    %cst_29 = arith.constant dense<0.000000e+00> : vector<8x128xf32>
    %157 = tpu.matmul %156, %1, %cst_29 {dimension_numbers = #tpu.dot_dimension_numbers<[1], [0], [0], [1], [0, 0, 1, 1], [], []>} : vector<8x64xbf16>, vector<64x128xbf16>, vector<8x128xf32> -> vector<8x128xf32>
    %158 = arith.addf %157, %13 : vector<8x128xf32>
    %159 = arith.truncf %135 : vector<8x32xf32> to vector<8x32xbf16>
    %cst_30 = arith.constant dense<0.000000e+00> : vector<8x128xf32>
    %160 = tpu.matmul %159, %2, %cst_30 {dimension_numbers = #tpu.dot_dimension_numbers<[1], [0], [0], [1], [0, 0, 1, 1], [], []>} : vector<8x32xbf16>, vector<32x128xbf16>, vector<8x128xf32> -> vector<8x128xf32>
    %161 = arith.addf %158, %160 : vector<8x128xf32>
    %162 = vector.extract_strided_slice %161 {offsets = [0, 0], sizes = [8, 96], strides = [1, 1]} : vector<8x128xf32> to vector<8x96xf32>
    %163 = arith.negf %162 : vector<8x96xf32>
    %164 = math.exp %163 : vector<8x96xf32>
    %cst_31 = arith.constant 1.000000e+00 : f32
    %165 = vector.broadcast %cst_31 : f32 to vector<8x96xf32>
    %166 = arith.addf %165, %164 : vector<8x96xf32>
    %167 = arith.divf %165, %166 : vector<8x96xf32>
    %168 = vector.extract_strided_slice %161 {offsets = [0, 96], sizes = [8, 32], strides = [1, 1]} : vector<8x128xf32> to vector<8x32xf32>
    %169 = math.tanh %168 : vector<8x32xf32>
    %170 = vector.extract_strided_slice %167 {offsets = [0, 0], sizes = [8, 32], strides = [1, 1]} : vector<8x96xf32> to vector<8x32xf32>
    %171 = vector.extract_strided_slice %167 {offsets = [0, 32], sizes = [8, 32], strides = [1, 1]} : vector<8x96xf32> to vector<8x32xf32>
    %172 = vector.extract_strided_slice %167 {offsets = [0, 64], sizes = [8, 32], strides = [1, 1]} : vector<8x96xf32> to vector<8x32xf32>
    %173 = arith.mulf %171, %133 : vector<8x32xf32>
    %174 = arith.mulf %170, %169 : vector<8x32xf32>
    %175 = arith.addf %173, %174 : vector<8x32xf32>
    %176 = math.tanh %175 : vector<8x32xf32>
    %177 = arith.mulf %172, %176 : vector<8x32xf32>
    %178 = vector.extract_strided_slice %10 {offsets = [32, 0], sizes = [8, 256], strides = [1, 1]} : vector<64x256xf32> to vector<8x256xf32>
    %179 = arith.truncf %155 : vector<8x64xf32> to vector<8x64xbf16>
    %cst_32 = arith.constant dense<0.000000e+00> : vector<8x256xf32>
    %180 = tpu.matmul %179, %0, %cst_32 {dimension_numbers = #tpu.dot_dimension_numbers<[1], [0], [0], [1], [0, 0, 1, 1], [], []>} : vector<8x64xbf16>, vector<64x256xbf16>, vector<8x256xf32> -> vector<8x256xf32>
    %181 = arith.addf %178, %180 : vector<8x256xf32>
    %182 = vector.extract_strided_slice %181 {offsets = [0, 0], sizes = [8, 192], strides = [1, 1]} : vector<8x256xf32> to vector<8x192xf32>
    %183 = arith.negf %182 : vector<8x192xf32>
    %184 = math.exp %183 : vector<8x192xf32>
    %cst_33 = arith.constant 1.000000e+00 : f32
    %185 = vector.broadcast %cst_33 : f32 to vector<8x192xf32>
    %186 = arith.addf %185, %184 : vector<8x192xf32>
    %187 = arith.divf %185, %186 : vector<8x192xf32>
    %188 = vector.extract_strided_slice %181 {offsets = [0, 192], sizes = [8, 64], strides = [1, 1]} : vector<8x256xf32> to vector<8x64xf32>
    %189 = math.tanh %188 : vector<8x64xf32>
    %190 = vector.extract_strided_slice %187 {offsets = [0, 0], sizes = [8, 64], strides = [1, 1]} : vector<8x192xf32> to vector<8x64xf32>
    %191 = vector.extract_strided_slice %187 {offsets = [0, 64], sizes = [8, 64], strides = [1, 1]} : vector<8x192xf32> to vector<8x64xf32>
    %192 = vector.extract_strided_slice %187 {offsets = [0, 128], sizes = [8, 64], strides = [1, 1]} : vector<8x192xf32> to vector<8x64xf32>
    %193 = arith.mulf %191, %153 : vector<8x64xf32>
    %194 = arith.mulf %190, %189 : vector<8x64xf32>
    %195 = arith.addf %193, %194 : vector<8x64xf32>
    %196 = math.tanh %195 : vector<8x64xf32>
    %197 = arith.mulf %192, %196 : vector<8x64xf32>
    %198 = arith.truncf %197 : vector<8x64xf32> to vector<8x64xbf16>
    %cst_34 = arith.constant dense<0.000000e+00> : vector<8x128xf32>
    %199 = tpu.matmul %198, %1, %cst_34 {dimension_numbers = #tpu.dot_dimension_numbers<[1], [0], [0], [1], [0, 0, 1, 1], [], []>} : vector<8x64xbf16>, vector<64x128xbf16>, vector<8x128xf32> -> vector<8x128xf32>
    %200 = arith.addf %199, %13 : vector<8x128xf32>
    %201 = arith.truncf %177 : vector<8x32xf32> to vector<8x32xbf16>
    %cst_35 = arith.constant dense<0.000000e+00> : vector<8x128xf32>
    %202 = tpu.matmul %201, %2, %cst_35 {dimension_numbers = #tpu.dot_dimension_numbers<[1], [0], [0], [1], [0, 0, 1, 1], [], []>} : vector<8x32xbf16>, vector<32x128xbf16>, vector<8x128xf32> -> vector<8x128xf32>
    %203 = arith.addf %200, %202 : vector<8x128xf32>
    %204 = vector.extract_strided_slice %203 {offsets = [0, 0], sizes = [8, 96], strides = [1, 1]} : vector<8x128xf32> to vector<8x96xf32>
    %205 = arith.negf %204 : vector<8x96xf32>
    %206 = math.exp %205 : vector<8x96xf32>
    %cst_36 = arith.constant 1.000000e+00 : f32
    %207 = vector.broadcast %cst_36 : f32 to vector<8x96xf32>
    %208 = arith.addf %207, %206 : vector<8x96xf32>
    %209 = arith.divf %207, %208 : vector<8x96xf32>
    %210 = vector.extract_strided_slice %203 {offsets = [0, 96], sizes = [8, 32], strides = [1, 1]} : vector<8x128xf32> to vector<8x32xf32>
    %211 = math.tanh %210 : vector<8x32xf32>
    %212 = vector.extract_strided_slice %209 {offsets = [0, 0], sizes = [8, 32], strides = [1, 1]} : vector<8x96xf32> to vector<8x32xf32>
    %213 = vector.extract_strided_slice %209 {offsets = [0, 32], sizes = [8, 32], strides = [1, 1]} : vector<8x96xf32> to vector<8x32xf32>
    %214 = vector.extract_strided_slice %209 {offsets = [0, 64], sizes = [8, 32], strides = [1, 1]} : vector<8x96xf32> to vector<8x32xf32>
    %215 = arith.mulf %213, %175 : vector<8x32xf32>
    %216 = arith.mulf %212, %211 : vector<8x32xf32>
    %217 = arith.addf %215, %216 : vector<8x32xf32>
    %218 = math.tanh %217 : vector<8x32xf32>
    %219 = arith.mulf %214, %218 : vector<8x32xf32>
    %220 = vector.extract_strided_slice %10 {offsets = [40, 0], sizes = [8, 256], strides = [1, 1]} : vector<64x256xf32> to vector<8x256xf32>
    %221 = arith.truncf %197 : vector<8x64xf32> to vector<8x64xbf16>
    %cst_37 = arith.constant dense<0.000000e+00> : vector<8x256xf32>
    %222 = tpu.matmul %221, %0, %cst_37 {dimension_numbers = #tpu.dot_dimension_numbers<[1], [0], [0], [1], [0, 0, 1, 1], [], []>} : vector<8x64xbf16>, vector<64x256xbf16>, vector<8x256xf32> -> vector<8x256xf32>
    %223 = arith.addf %220, %222 : vector<8x256xf32>
    %224 = vector.extract_strided_slice %223 {offsets = [0, 0], sizes = [8, 192], strides = [1, 1]} : vector<8x256xf32> to vector<8x192xf32>
    %225 = arith.negf %224 : vector<8x192xf32>
    %226 = math.exp %225 : vector<8x192xf32>
    %cst_38 = arith.constant 1.000000e+00 : f32
    %227 = vector.broadcast %cst_38 : f32 to vector<8x192xf32>
    %228 = arith.addf %227, %226 : vector<8x192xf32>
    %229 = arith.divf %227, %228 : vector<8x192xf32>
    %230 = vector.extract_strided_slice %223 {offsets = [0, 192], sizes = [8, 64], strides = [1, 1]} : vector<8x256xf32> to vector<8x64xf32>
    %231 = math.tanh %230 : vector<8x64xf32>
    %232 = vector.extract_strided_slice %229 {offsets = [0, 0], sizes = [8, 64], strides = [1, 1]} : vector<8x192xf32> to vector<8x64xf32>
    %233 = vector.extract_strided_slice %229 {offsets = [0, 64], sizes = [8, 64], strides = [1, 1]} : vector<8x192xf32> to vector<8x64xf32>
    %234 = vector.extract_strided_slice %229 {offsets = [0, 128], sizes = [8, 64], strides = [1, 1]} : vector<8x192xf32> to vector<8x64xf32>
    %235 = arith.mulf %233, %195 : vector<8x64xf32>
    %236 = arith.mulf %232, %231 : vector<8x64xf32>
    %237 = arith.addf %235, %236 : vector<8x64xf32>
    %238 = math.tanh %237 : vector<8x64xf32>
    %239 = arith.mulf %234, %238 : vector<8x64xf32>
    %240 = arith.truncf %239 : vector<8x64xf32> to vector<8x64xbf16>
    %cst_39 = arith.constant dense<0.000000e+00> : vector<8x128xf32>
    %241 = tpu.matmul %240, %1, %cst_39 {dimension_numbers = #tpu.dot_dimension_numbers<[1], [0], [0], [1], [0, 0, 1, 1], [], []>} : vector<8x64xbf16>, vector<64x128xbf16>, vector<8x128xf32> -> vector<8x128xf32>
    %242 = arith.addf %241, %13 : vector<8x128xf32>
    %243 = arith.truncf %219 : vector<8x32xf32> to vector<8x32xbf16>
    %cst_40 = arith.constant dense<0.000000e+00> : vector<8x128xf32>
    %244 = tpu.matmul %243, %2, %cst_40 {dimension_numbers = #tpu.dot_dimension_numbers<[1], [0], [0], [1], [0, 0, 1, 1], [], []>} : vector<8x32xbf16>, vector<32x128xbf16>, vector<8x128xf32> -> vector<8x128xf32>
    %245 = arith.addf %242, %244 : vector<8x128xf32>
    %246 = vector.extract_strided_slice %245 {offsets = [0, 0], sizes = [8, 96], strides = [1, 1]} : vector<8x128xf32> to vector<8x96xf32>
    %247 = arith.negf %246 : vector<8x96xf32>
    %248 = math.exp %247 : vector<8x96xf32>
    %cst_41 = arith.constant 1.000000e+00 : f32
    %249 = vector.broadcast %cst_41 : f32 to vector<8x96xf32>
    %250 = arith.addf %249, %248 : vector<8x96xf32>
    %251 = arith.divf %249, %250 : vector<8x96xf32>
    %252 = vector.extract_strided_slice %245 {offsets = [0, 96], sizes = [8, 32], strides = [1, 1]} : vector<8x128xf32> to vector<8x32xf32>
    %253 = math.tanh %252 : vector<8x32xf32>
    %254 = vector.extract_strided_slice %251 {offsets = [0, 0], sizes = [8, 32], strides = [1, 1]} : vector<8x96xf32> to vector<8x32xf32>
    %255 = vector.extract_strided_slice %251 {offsets = [0, 32], sizes = [8, 32], strides = [1, 1]} : vector<8x96xf32> to vector<8x32xf32>
    %256 = vector.extract_strided_slice %251 {offsets = [0, 64], sizes = [8, 32], strides = [1, 1]} : vector<8x96xf32> to vector<8x32xf32>
    %257 = arith.mulf %255, %217 : vector<8x32xf32>
    %258 = arith.mulf %254, %253 : vector<8x32xf32>
    %259 = arith.addf %257, %258 : vector<8x32xf32>
    %260 = math.tanh %259 : vector<8x32xf32>
    %261 = arith.mulf %256, %260 : vector<8x32xf32>
    %262 = vector.extract_strided_slice %10 {offsets = [48, 0], sizes = [8, 256], strides = [1, 1]} : vector<64x256xf32> to vector<8x256xf32>
    %263 = arith.truncf %239 : vector<8x64xf32> to vector<8x64xbf16>
    %cst_42 = arith.constant dense<0.000000e+00> : vector<8x256xf32>
    %264 = tpu.matmul %263, %0, %cst_42 {dimension_numbers = #tpu.dot_dimension_numbers<[1], [0], [0], [1], [0, 0, 1, 1], [], []>} : vector<8x64xbf16>, vector<64x256xbf16>, vector<8x256xf32> -> vector<8x256xf32>
    %265 = arith.addf %262, %264 : vector<8x256xf32>
    %266 = vector.extract_strided_slice %265 {offsets = [0, 0], sizes = [8, 192], strides = [1, 1]} : vector<8x256xf32> to vector<8x192xf32>
    %267 = arith.negf %266 : vector<8x192xf32>
    %268 = math.exp %267 : vector<8x192xf32>
    %cst_43 = arith.constant 1.000000e+00 : f32
    %269 = vector.broadcast %cst_43 : f32 to vector<8x192xf32>
    %270 = arith.addf %269, %268 : vector<8x192xf32>
    %271 = arith.divf %269, %270 : vector<8x192xf32>
    %272 = vector.extract_strided_slice %265 {offsets = [0, 192], sizes = [8, 64], strides = [1, 1]} : vector<8x256xf32> to vector<8x64xf32>
    %273 = math.tanh %272 : vector<8x64xf32>
    %274 = vector.extract_strided_slice %271 {offsets = [0, 0], sizes = [8, 64], strides = [1, 1]} : vector<8x192xf32> to vector<8x64xf32>
    %275 = vector.extract_strided_slice %271 {offsets = [0, 64], sizes = [8, 64], strides = [1, 1]} : vector<8x192xf32> to vector<8x64xf32>
    %276 = vector.extract_strided_slice %271 {offsets = [0, 128], sizes = [8, 64], strides = [1, 1]} : vector<8x192xf32> to vector<8x64xf32>
    %277 = arith.mulf %275, %237 : vector<8x64xf32>
    %278 = arith.mulf %274, %273 : vector<8x64xf32>
    %279 = arith.addf %277, %278 : vector<8x64xf32>
    %280 = math.tanh %279 : vector<8x64xf32>
    %281 = arith.mulf %276, %280 : vector<8x64xf32>
    %282 = arith.truncf %281 : vector<8x64xf32> to vector<8x64xbf16>
    %cst_44 = arith.constant dense<0.000000e+00> : vector<8x128xf32>
    %283 = tpu.matmul %282, %1, %cst_44 {dimension_numbers = #tpu.dot_dimension_numbers<[1], [0], [0], [1], [0, 0, 1, 1], [], []>} : vector<8x64xbf16>, vector<64x128xbf16>, vector<8x128xf32> -> vector<8x128xf32>
    %284 = arith.addf %283, %13 : vector<8x128xf32>
    %285 = arith.truncf %261 : vector<8x32xf32> to vector<8x32xbf16>
    %cst_45 = arith.constant dense<0.000000e+00> : vector<8x128xf32>
    %286 = tpu.matmul %285, %2, %cst_45 {dimension_numbers = #tpu.dot_dimension_numbers<[1], [0], [0], [1], [0, 0, 1, 1], [], []>} : vector<8x32xbf16>, vector<32x128xbf16>, vector<8x128xf32> -> vector<8x128xf32>
    %287 = arith.addf %284, %286 : vector<8x128xf32>
    %288 = vector.extract_strided_slice %287 {offsets = [0, 0], sizes = [8, 96], strides = [1, 1]} : vector<8x128xf32> to vector<8x96xf32>
    %289 = arith.negf %288 : vector<8x96xf32>
    %290 = math.exp %289 : vector<8x96xf32>
    %cst_46 = arith.constant 1.000000e+00 : f32
    %291 = vector.broadcast %cst_46 : f32 to vector<8x96xf32>
    %292 = arith.addf %291, %290 : vector<8x96xf32>
    %293 = arith.divf %291, %292 : vector<8x96xf32>
    %294 = vector.extract_strided_slice %287 {offsets = [0, 96], sizes = [8, 32], strides = [1, 1]} : vector<8x128xf32> to vector<8x32xf32>
    %295 = math.tanh %294 : vector<8x32xf32>
    %296 = vector.extract_strided_slice %293 {offsets = [0, 0], sizes = [8, 32], strides = [1, 1]} : vector<8x96xf32> to vector<8x32xf32>
    %297 = vector.extract_strided_slice %293 {offsets = [0, 32], sizes = [8, 32], strides = [1, 1]} : vector<8x96xf32> to vector<8x32xf32>
    %298 = vector.extract_strided_slice %293 {offsets = [0, 64], sizes = [8, 32], strides = [1, 1]} : vector<8x96xf32> to vector<8x32xf32>
    %299 = arith.mulf %297, %259 : vector<8x32xf32>
    %300 = arith.mulf %296, %295 : vector<8x32xf32>
    %301 = arith.addf %299, %300 : vector<8x32xf32>
    %302 = math.tanh %301 : vector<8x32xf32>
    %303 = arith.mulf %298, %302 : vector<8x32xf32>
    %304 = vector.extract_strided_slice %10 {offsets = [56, 0], sizes = [8, 256], strides = [1, 1]} : vector<64x256xf32> to vector<8x256xf32>
    %305 = arith.truncf %281 : vector<8x64xf32> to vector<8x64xbf16>
    %cst_47 = arith.constant dense<0.000000e+00> : vector<8x256xf32>
    %306 = tpu.matmul %305, %0, %cst_47 {dimension_numbers = #tpu.dot_dimension_numbers<[1], [0], [0], [1], [0, 0, 1, 1], [], []>} : vector<8x64xbf16>, vector<64x256xbf16>, vector<8x256xf32> -> vector<8x256xf32>
    %307 = arith.addf %304, %306 : vector<8x256xf32>
    %308 = vector.extract_strided_slice %307 {offsets = [0, 0], sizes = [8, 192], strides = [1, 1]} : vector<8x256xf32> to vector<8x192xf32>
    %309 = arith.negf %308 : vector<8x192xf32>
    %310 = math.exp %309 : vector<8x192xf32>
    %cst_48 = arith.constant 1.000000e+00 : f32
    %311 = vector.broadcast %cst_48 : f32 to vector<8x192xf32>
    %312 = arith.addf %311, %310 : vector<8x192xf32>
    %313 = arith.divf %311, %312 : vector<8x192xf32>
    %314 = vector.extract_strided_slice %307 {offsets = [0, 192], sizes = [8, 64], strides = [1, 1]} : vector<8x256xf32> to vector<8x64xf32>
    %315 = math.tanh %314 : vector<8x64xf32>
    %316 = vector.extract_strided_slice %313 {offsets = [0, 0], sizes = [8, 64], strides = [1, 1]} : vector<8x192xf32> to vector<8x64xf32>
    %317 = vector.extract_strided_slice %313 {offsets = [0, 64], sizes = [8, 64], strides = [1, 1]} : vector<8x192xf32> to vector<8x64xf32>
    %318 = vector.extract_strided_slice %313 {offsets = [0, 128], sizes = [8, 64], strides = [1, 1]} : vector<8x192xf32> to vector<8x64xf32>
    %319 = arith.mulf %317, %279 : vector<8x64xf32>
    %320 = arith.mulf %316, %315 : vector<8x64xf32>
    %321 = arith.addf %319, %320 : vector<8x64xf32>
    %322 = math.tanh %321 : vector<8x64xf32>
    %323 = arith.mulf %318, %322 : vector<8x64xf32>
    %324 = arith.truncf %323 : vector<8x64xf32> to vector<8x64xbf16>
    %cst_49 = arith.constant dense<0.000000e+00> : vector<8x128xf32>
    %325 = tpu.matmul %324, %1, %cst_49 {dimension_numbers = #tpu.dot_dimension_numbers<[1], [0], [0], [1], [0, 0, 1, 1], [], []>} : vector<8x64xbf16>, vector<64x128xbf16>, vector<8x128xf32> -> vector<8x128xf32>
    %326 = arith.addf %325, %13 : vector<8x128xf32>
    %327 = arith.truncf %303 : vector<8x32xf32> to vector<8x32xbf16>
    %cst_50 = arith.constant dense<0.000000e+00> : vector<8x128xf32>
    %328 = tpu.matmul %327, %2, %cst_50 {dimension_numbers = #tpu.dot_dimension_numbers<[1], [0], [0], [1], [0, 0, 1, 1], [], []>} : vector<8x32xbf16>, vector<32x128xbf16>, vector<8x128xf32> -> vector<8x128xf32>
    %329 = arith.addf %326, %328 : vector<8x128xf32>
    %330 = vector.extract_strided_slice %329 {offsets = [0, 0], sizes = [8, 96], strides = [1, 1]} : vector<8x128xf32> to vector<8x96xf32>
    %331 = arith.negf %330 : vector<8x96xf32>
    %332 = math.exp %331 : vector<8x96xf32>
    %cst_51 = arith.constant 1.000000e+00 : f32
    %333 = vector.broadcast %cst_51 : f32 to vector<8x96xf32>
    %334 = arith.addf %333, %332 : vector<8x96xf32>
    %335 = arith.divf %333, %334 : vector<8x96xf32>
    %336 = vector.extract_strided_slice %329 {offsets = [0, 96], sizes = [8, 32], strides = [1, 1]} : vector<8x128xf32> to vector<8x32xf32>
    %337 = math.tanh %336 : vector<8x32xf32>
    %338 = vector.extract_strided_slice %335 {offsets = [0, 0], sizes = [8, 32], strides = [1, 1]} : vector<8x96xf32> to vector<8x32xf32>
    %339 = vector.extract_strided_slice %335 {offsets = [0, 32], sizes = [8, 32], strides = [1, 1]} : vector<8x96xf32> to vector<8x32xf32>
    %340 = vector.extract_strided_slice %335 {offsets = [0, 64], sizes = [8, 32], strides = [1, 1]} : vector<8x96xf32> to vector<8x32xf32>
    %341 = arith.mulf %339, %301 : vector<8x32xf32>
    %342 = arith.mulf %338, %337 : vector<8x32xf32>
    %343 = arith.addf %341, %342 : vector<8x32xf32>
    %344 = math.tanh %343 : vector<8x32xf32>
    %345 = arith.mulf %340, %344 : vector<8x32xf32>
    %c0_52 = arith.constant 0 : index
    %c0_53 = arith.constant 0 : index
    %346 = vector.load %arg7[%c0_52, %c0_53] : memref<1x32xf32, #tpu.memory_space<vmem>>, vector<1x32xf32>
    %347 = vector.broadcast %346 : vector<1x32xf32> to vector<8x32xf32>
    %348 = arith.mulf %345, %347 : vector<8x32xf32>
    %cst_54 = arith.constant dense<0.000000e+00> : vector<8xf32>
    %349 = vector.multi_reduction <add>, %348, %cst_54 [1] : vector<8x32xf32> to vector<8xf32>
    %350 = vector.shape_cast %349 : vector<8xf32> to vector<8x1xf32>
    %c0_55 = arith.constant 0 : index
    %c0_56 = arith.constant 0 : index
    %351 = vector.load %arg8[%c0_55, %c0_56] : memref<1x1xf32, #tpu.memory_space<vmem>>, vector<1x1xf32>
    %352 = vector.broadcast %351 : vector<1x1xf32> to vector<8x1xf32>
    %353 = arith.addf %350, %352 : vector<8x1xf32>
    %354 = arith.negf %353 : vector<8x1xf32>
    %355 = math.exp %354 : vector<8x1xf32>
    %cst_57 = arith.constant 1.000000e+00 : f32
    %356 = vector.broadcast %cst_57 : f32 to vector<8x1xf32>
    %357 = arith.addf %356, %355 : vector<8x1xf32>
    %358 = arith.divf %356, %357 : vector<8x1xf32>
    %c0_58 = arith.constant 0 : index
    %c0_59 = arith.constant 0 : index
    %359 = vector.load %arg9[%c0_58, %c0_59] : memref<8x1xf32, #tpu.memory_space<vmem>>, vector<8x1xf32>
    tpu.vector_store %arg9[%c0_58, %c0_59], %358 {strides = array<i32>} : memref<8x1xf32, #tpu.memory_space<vmem>>, vector<8x1xf32>,
    return
  }
}

</mosaic_0001>

<llo_original>
// kernel: lstm_classifier_forward.1
$region0: #{lstm_classifier_forward.1}
  #allocation0 [shape = 'u32[]', space=smem, size = 0x4, offset = 0x4, fixed_abs, tag = 'smem constant byte address 0x4 - core index']
  #allocation1 [shape = 'u32[144,128]{1,0:T(1,128)}', space=vmem, size = 0x12000, scoped, tag = 'internal scratch']
  #allocation2 [shape = 'f32[1,1]{1,0:T(1,128)S(1)}', space=vmem, size = 0x200, scoped, tag = 'scoped memory for lstm_classifier_forward.1']
  %s0 = inlined_call_operand.vmem [shape: f32[64,1], index: 0, kind: input, shape index: {}]
  %s1 = inlined_call_operand.vmem [shape: f32[1,256], index: 1, kind: input, shape index: {}]
  %s2 = inlined_call_operand.vmem [shape: bf16[64,256], index: 2, kind: input, shape index: {}]
  %s3 = inlined_call_operand.vmem [shape: f32[1,256], index: 3, kind: input, shape index: {}]
  %s4 = inlined_call_operand.vmem [shape: bf16[64,128], index: 4, kind: input, shape index: {}]
  %s5 = inlined_call_operand.vmem [shape: bf16[32,128], index: 5, kind: input, shape index: {}]
  %s6 = inlined_call_operand.hbm [shape: f32[1,128], index: 6, kind: input, shape index: {}]
  %s7 = inlined_call_operand.hbm [shape: f32[1,32], index: 7, kind: input, shape index: {}]
  %s8 = inlined_call_operand.<no memory space> [shape: f32[1,1], index: 8, kind: input, shape index: {}]
  %s9 = inlined_call_operand.vmem [shape: f32[8,1], index: 9, kind: output, shape index: {}]
  %s10 = sld [smem:[#allocation0]]
  $region54: #{lstm_classifier_forward.1} parent=0
    _
  %s12 = ssub.s32 1, %s10
  %s13 = scalar_select 0, %s12, %s10
  %v14 = vstv %s8
  %15 = vst [vmem:[#allocation2] sm:$0x1] %v14
  $region1: #{lstm_classifier_forward.1} parent=0
    #allocation3 [shape = 'u8[512]{0}', space=vmem, size = 0x400, scoped, tag = 'input window, operand 6, single buffered']
    #allocation4 [shape = 's32[1]{0}', space=sflag, size = 0x4, scoped, tag = 'scoped memory for lstm_classifier_forward.1']
    #allocation5 [shape = 'u8[512]{0}', space=vmem, size = 0x400, scoped, tag = 'input window, operand 7, single buffered']
    #allocation6 [shape = 's32[1]{0}', space=sflag, size = 0x4, scoped, tag = 'scoped memory for lstm_classifier_forward.1']
    %16 = vsyncpa [#allocation4], 0
    %17 = vsyncpa [#allocation6], 0
    // Predicated region
    $region2: #{lstm_classifier_forward.1} parent=1 // pred_check
      _
    $region3: #{lstm_classifier_forward.1} parent=1 // pred_check_branch
      %19 = sbr.rel (0) target = $region5
    $region4: #{lstm_classifier_forward.1} parent=1 // pred_region
      _
    $region5: #{lstm_classifier_forward.1} parent=1 // pred_fallthru
      _
    // Predicated region
    $region6: #{lstm_classifier_forward.1} parent=1 // pred_check
      _
    $region7: #{lstm_classifier_forward.1} parent=1 // pred_check_branch
      %21 = sbr.rel (0) target = $region9
    $region8: #{lstm_classifier_forward.1} parent=1 // pred_region
      _
    $region9: #{lstm_classifier_forward.1} parent=1 // pred_fallthru
      _
    // Predicated region
    $region10: #{lstm_classifier_forward.1} parent=1 // pred_check
      _
    $region11: #{lstm_classifier_forward.1} parent=1 // pred_check_branch
      %23 = sbr.rel (0) target = $region13
    $region12: #{lstm_classifier_forward.1} parent=1 // pred_region
      _
    $region13: #{lstm_classifier_forward.1} parent=1 // pred_fallthru
      _
    // Predicated region
    $region14: #{lstm_classifier_forward.1} parent=1 // pred_check
      _
    $region15: #{lstm_classifier_forward.1} parent=1 // pred_check_branch
      %25 = sbr.rel (0) target = $region17
    $region16: #{lstm_classifier_forward.1} parent=1 // pred_region
      _
    $region17: #{lstm_classifier_forward.1} parent=1 // pred_fallthru
      _
    // Predicated region
    $region18: #{lstm_classifier_forward.1} parent=1 // pred_check
      _
    $region19: #{lstm_classifier_forward.1} parent=1 // pred_check_branch
      %27 = sbr.rel (0) target = $region21
    $region20: #{lstm_classifier_forward.1} parent=1 // pred_region
      _
    $region21: #{lstm_classifier_forward.1} parent=1 // pred_fallthru
      _
    // Predicated region
    $region22: #{lstm_classifier_forward.1} parent=1 // pred_check
      _
    $region23: #{lstm_classifier_forward.1} parent=1 // pred_check_branch
      %29 = sbr.rel (0) target = $region25
    $region24: #{lstm_classifier_forward.1} parent=1 // pred_region
      _
    $region25: #{lstm_classifier_forward.1} parent=1 // pred_fallthru
      _
    // Predicated region
    $region26: #{lstm_classifier_forward.1} parent=1 // pred_check
      _
    $region27: #{lstm_classifier_forward.1} parent=1 // pred_check_branch
      %31 = sbr.rel (0) target = $region29
    $region28: #{lstm_classifier_forward.1} parent=1 // pred_region
      %s33 = ssub.s32 16, 16
      %34 = vsyncadd [#allocation4], %s33
      %s36 = sshll.u32 [#allocation3], 4
      %s37 = int_to_ptr.vmem [resolvable:$true] %s36
      %39 = dma.hbm_to_vmem [thread:$0]  %s6, 16, %s37, [#allocation4]
    $region29: #{lstm_classifier_forward.1} parent=1 // pred_fallthru
      _
    // Predicated region
    $region30: #{lstm_classifier_forward.1} parent=1 // pred_check
      _
    $region31: #{lstm_classifier_forward.1} parent=1 // pred_check_branch
      %41 = sbr.rel (0) target = $region33
    $region32: #{lstm_classifier_forward.1} parent=1 // pred_region
      %s43 = ssub.s32 16, 16
      %44 = vsyncadd [#allocation6], %s43
      %s46 = sshll.u32 [#allocation5], 4
      %s47 = int_to_ptr.vmem [resolvable:$true] %s46
      %49 = dma.hbm_to_vmem [thread:$0]  %s7, 16, %s47, [#allocation6]
    $region33: #{lstm_classifier_forward.1} parent=1 // pred_fallthru
      _
    // Predicated region
    $region34: #{lstm_classifier_forward.1} parent=1 // pred_check
      _
    $region35: #{lstm_classifier_forward.1} parent=1 // pred_check_branch
      %51 = sbr.rel (0) target = $region37
    $region36: #{lstm_classifier_forward.1} parent=1 // pred_region
      _
    $region37: #{lstm_classifier_forward.1} parent=1 // pred_fallthru
      _
    // Predicated region
    $region38: #{lstm_classifier_forward.1} parent=1 // pred_check
      _
    $region39: #{lstm_classifier_forward.1} parent=1 // pred_check_branch
      %53 = sbr.rel (0) target = $region41
    $region40: #{lstm_classifier_forward.1} parent=1 // pred_region
      %54 = dma.done [#allocation4], 16
    $region41: #{lstm_classifier_forward.1} parent=1 // pred_fallthru
      _
    // Predicated region
    $region42: #{lstm_classifier_forward.1} parent=1 // pred_check
      _
    $region43: #{lstm_classifier_forward.1} parent=1 // pred_check_branch
      %56 = sbr.rel (0) target = $region45
    $region44: #{lstm_classifier_forward.1} parent=1 // pred_region
      %57 = dma.done [#allocation6], 16
    $region45: #{lstm_classifier_forward.1} parent=1 // pred_fallthru
      _
    %v59 = vld [vmem:[%s2] sm:$0xff]
    %v60 = vld [vmem:[%s2 + $0x8] sm:$0xff]
    %v61 = vld [vmem:[%s2 + $0x10] sm:$0xff]
    %v62 = vld [vmem:[%s2 + $0x18] sm:$0xff]
    %v63 = vld [vmem:[%s2 + $0x20] sm:$0xff]
    %v64 = vld [vmem:[%s2 + $0x28] sm:$0xff]
    %v65 = vld [vmem:[%s2 + $0x30] sm:$0xff]
    %v66 = vld [vmem:[%s2 + $0x38] sm:$0xff]
    %v67 = vld [vmem:[%s4] sm:$0xf]
    %v68 = vld [vmem:[%s4 + $0x4] sm:$0xf]
    %v69 = vld [vmem:[%s4 + $0x8] sm:$0xf]
    %v70 = vld [vmem:[%s4 + $0xc] sm:$0xf]
    %v71 = vld [vmem:[%s4 + $0x10] sm:$0xf]
    %v72 = vld [vmem:[%s4 + $0x14] sm:$0xf]
    %v73 = vld [vmem:[%s4 + $0x18] sm:$0xf]
    %v74 = vld [vmem:[%s4 + $0x1c] sm:$0xf]
    %v75 = vld [vmem:[%s5] sm:$0xf]
    %v76 = vld [vmem:[%s5 + $0x4] sm:$0xf]
    %v77 = vld [vmem:[%s5 + $0x8] sm:$0xf]
    %v78 = vld [vmem:[%s5 + $0xc] sm:$0xf]
    %v79 = vld [vmem:[%s0] sm:$0xff]
    %v80 = vld [vmem:[%s0 + $0x8] sm:$0xff]
    %v81 = vld [vmem:[%s0 + $0x10] sm:$0xff]
    %v82 = vld [vmem:[%s0 + $0x18] sm:$0xff]
    %v83 = vld [vmem:[%s0 + $0x20] sm:$0xff]
    %v84 = vld [vmem:[%s0 + $0x28] sm:$0xff]
    %v85 = vld [vmem:[%s0 + $0x30] sm:$0xff]
    %v86 = vld [vmem:[%s0 + $0x38] sm:$0xff]
    %v87 = vld [vmem:[%s1] sm:$0x3]
    %89 = vset.pattern.permute.xlu0 0
    %90 = vperm.xlu0 %89, %v79
    %v91 = vpop.permute.xlu0 %90
    %94 = vset.pattern.permute.xlu0 0
    %95 = vperm.xlu0 %94, %v80
    %v96 = vpop.permute.xlu0 %95
    %99 = vset.pattern.permute.xlu0 0
    %100 = vperm.xlu0 %99, %v81
    %v101 = vpop.permute.xlu0 %100
    %104 = vset.pattern.permute.xlu0 0
    %105 = vperm.xlu0 %104, %v82
    %v106 = vpop.permute.xlu0 %105
    %109 = vset.pattern.permute.xlu0 0
    %110 = vperm.xlu0 %109, %v83
    %v111 = vpop.permute.xlu0 %110
    %114 = vset.pattern.permute.xlu0 0
    %115 = vperm.xlu0 %114, %v84
    %v116 = vpop.permute.xlu0 %115
    %119 = vset.pattern.permute.xlu0 0
    %120 = vperm.xlu0 %119, %v85
    %v121 = vpop.permute.xlu0 %120
    %124 = vset.pattern.permute.xlu0 0
    %125 = vperm.xlu0 %124, %v86
    %v126 = vpop.permute.xlu0 %125
    %v129 = vlaneseq
    %v130 = vshrl.u32 %v129, 7
    %v131 = vsub.s32 0, %v130
    %v132 = vrot.slane %v87, %v131
    %v133 = vlaneseq
    %v134 = vshrl.u32 %v133, 7
    %v135 = vsub.s32 1, %v134
    %v136 = vrot.slane %v87, %v135
    %v139 = vmul.f32 %v91, %v132
    %v140 = vmul.f32 %v91, %v136
    %v141 = vmul.f32 %v96, %v132
    %v142 = vmul.f32 %v96, %v136
    %v143 = vmul.f32 %v101, %v132
    %v144 = vmul.f32 %v101, %v136
    %v145 = vmul.f32 %v106, %v132
    %v146 = vmul.f32 %v106, %v136
    %v147 = vmul.f32 %v111, %v132
    %v148 = vmul.f32 %v111, %v136
    %v149 = vmul.f32 %v116, %v132
    %v150 = vmul.f32 %v116, %v136
    %v151 = vmul.f32 %v121, %v132
    %v152 = vmul.f32 %v121, %v136
    %v153 = vmul.f32 %v126, %v132
    %v154 = vmul.f32 %v126, %v136
    %v155 = vld [vmem:[%s3] sm:$0x3]
    %v157 = vlaneseq
    %v158 = vshrl.u32 %v157, 7
    %v159 = vsub.s32 0, %v158
    %v160 = vrot.slane %v155, %v159
    %v161 = vlaneseq
    %v162 = vshrl.u32 %v161, 7
    %v163 = vsub.s32 1, %v162
    %v164 = vrot.slane %v155, %v163
    %v167 = vadd.f32 %v139, %v160
    %v168 = vadd.f32 %v140, %v164
    %v169 = vadd.f32 %v141, %v160
    %v170 = vadd.f32 %v142, %v164
    %v171 = vadd.f32 %v143, %v160
    %v172 = vadd.f32 %v144, %v164
    %v173 = vadd.f32 %v145, %v160
    %v174 = vadd.f32 %v146, %v164
    %v175 = vadd.f32 %v147, %v160
    %v176 = vadd.f32 %v148, %v164
    %v177 = vadd.f32 %v149, %v160
    %v178 = vadd.f32 %v150, %v164
    %v179 = vadd.f32 %v151, %v160
    %v180 = vadd.f32 %v152, %v164
    %v181 = vadd.f32 %v153, %v160
    %v182 = vadd.f32 %v154, %v164
    %v183 = vld [vmem:[#allocation3] sm:$0x1]
    %v185 = vlaneseq
    %v186 = vshrl.u32 %v185, 7
    %v187 = vsub.s32 0, %v186
    %v188 = vrot.slane %v183, %v187
    %v190 = vxor.u32 %v167, 2147483648
    %v191 = vxor.u32 %v168, 2147483648
    %v192 = vmul.f32 %v190, 1.442695
    %v193 = vpow.pop %v192
    %v194 = vmul.f32 %v191, 1.442695
    %v195 = vpow.pop %v194
    %v196 = vadd.f32 %v193, 1.0
    %v197 = vadd.f32 %v195, 1.0
    %v198 = vrcp.pop %v196
    %v199 = vmul.f32 1.0, %v198
    %v200 = vrcp.pop %v197
    %v201 = vmul.f32 1.0, %v200
    %v202 = vtanh.pop %v168
    %v203 = vmul.f32 %v199, 0.0
    %205 = vrot.lane.b32.xlu0 %v202, 64
    %v206 = vpop.permute.xlu0 %205
    %v208 = vmul.f32 %v199, %v206
    %210 = vrot.lane.b32.xlu0 %v208, 64
    %v211 = vpop.permute.xlu0 %210
    %v213 = vadd.f32 %v203, %v211
    %v214 = vtanh.pop %v213
    %216 = vrot.lane.b32.xlu0 %v214, 64
    %v217 = vpop.permute.xlu0 %216
    %v219 = vmul.f32 %v201, %v217
    %v220 = vpack.c.bf16 %v219, %v219
    %v229 = vunpack.c.l.b16 %v67
    %v230 = vunpack.c.l.b16 %v68
    %v231 = vunpack.c.l.b16 %v69
    %v232 = vunpack.c.l.b16 %v70
    %v233 = vunpack.c.l.b16 %v71
    %v234 = vunpack.c.l.b16 %v72
    %v235 = vunpack.c.l.b16 %v73
    %v236 = vunpack.c.l.b16 %v74
    %v237 = vpack.c.b16 %v230, %v229
    %v238 = vpack.c.b16 %v232, %v231
    %v239 = vpack.c.b16 %v234, %v233
    %v240 = vpack.c.b16 %v236, %v235
    %vm245 = vcmask 523264
    %v247 = vsel %vm245, %v220, 0
    %249 = vmatprep.subr.bf16.mxu0 0
    %250 = vmatpush1.bf16.msra.mxu0 %v237
    %251 = vmatprep.subr.bf16.mxu0 0
    %252 = vmatpush1.bf16.msra.mxu0 %v238
    %253 = vmatprep.subr.bf16.mxu0 0
    %254 = vmatpush1.bf16.msra.mxu0 %v239
    %255 = vmatprep.subr.bf16.mxu0 0
    %256 = vmatpush1.bf16.msra.mxu0 %v240
    %257 = vmatprep.subr.bf16.mxu0 0
    %258 = vmatpush1.bf16.msra.mxu0 0
    %259 = vmatprep.subr.bf16.mxu0 0
    %260 = vmatpush1.bf16.msra.mxu0 0
    %261 = vmatprep.subr.bf16.mxu0 0
    %262 = vmatpush1.bf16.msra.mxu0 0
    %263 = vmatprep.subr.bf16.mxu0 0
    %264 = vmatpush1.bf16.msra.mxu0 0
    %265 = vmatprep.subr.bf16.mxu0 0
    %266 = vmatpush1.bf16.msra.mxu0 0
    %267 = vmatprep.subr.bf16.mxu0 0
    %268 = vmatpush1.bf16.msra.mxu0 0
    %269 = vmatprep.subr.bf16.mxu0 0
    %270 = vmatpush1.bf16.msra.mxu0 0
    %271 = vmatprep.subr.bf16.mxu0 0
    %272 = vmatpush1.bf16.msra.mxu0 0
    %273 = vmatprep.subr.bf16.mxu0 0
    %274 = vmatpush1.bf16.msra.mxu0 0
    %275 = vmatprep.subr.bf16.mxu0 0
    %276 = vmatpush1.bf16.msra.mxu0 0
    %277 = vmatprep.subr.bf16.mxu0 0
    %278 = vmatpush1.bf16.msra.mxu0 0
    %279 = vmatprep.subr.bf16.mxu0 0
    %280 = vmatpush1.bf16.msra.mxu0 0
    %281 = vmatprep.mubr.bf16.mxu0 0
    %282 = vmatmul.mubr.bf16.gmra.mrb[0].mxu0 %v247
    %v283 = vpop.f32.mrb[0].mxu0
    %v284 = vadd.f32 %v188, %v283
    %v285 = vpop.f32.mrb[0].mxu0
    %v286 = vpop.f32.mrb[0].mxu0
    %v287 = vpop.f32.mrb[0].mxu0
    %288 = vdwg.mxu0
    %v289 = vxor.u32 %v284, 2147483648
    %v290 = vmul.f32 %v289, 1.442695
    %v291 = vpow.pop %v290
    %v292 = vadd.f32 %v291, 1.0
    %v293 = vrcp.pop %v292
    %v294 = vmul.f32 1.0, %v293
    %v295 = vtanh.pop %v284
    %v296 = vmul.f32 %v294, 0.0
    %298 = vrot.lane.b32.xlu0 %v295, 32
    %v299 = vpop.permute.xlu0 %298
    %v301 = vmul.f32 %v294, %v299
    %303 = vrot.lane.b32.xlu0 %v301, 32
    %v304 = vpop.permute.xlu0 %303
    %v306 = vadd.f32 %v296, %v304
    %v307 = vtanh.pop %v306
    %309 = vrot.lane.b32.xlu0 %v307, 32
    %v310 = vpop.permute.xlu0 %309
    %v312 = vmul.f32 %v294, %v310
    %v321 = vunpack.c.l.b16 %v59
    %v322 = vunpack.c.h.b16 %v59
    %v323 = vunpack.c.l.b16 %v60
    %v324 = vunpack.c.h.b16 %v60
    %v325 = vunpack.c.l.b16 %v61
    %v326 = vunpack.c.h.b16 %v61
    %v327 = vunpack.c.l.b16 %v62
    %v328 = vunpack.c.h.b16 %v62
    %v329 = vunpack.c.l.b16 %v63
    %v330 = vunpack.c.h.b16 %v63
    %v331 = vunpack.c.l.b16 %v64
    %v332 = vunpack.c.h.b16 %v64
    %v333 = vunpack.c.l.b16 %v65
    %v334 = vunpack.c.h.b16 %v65
    %v335 = vunpack.c.l.b16 %v66
    %v336 = vunpack.c.h.b16 %v66
    %v337 = vpack.c.b16 %v323, %v321
    %v338 = vpack.c.b16 %v324, %v322
    %v339 = vpack.c.b16 %v327, %v325
    %v340 = vpack.c.b16 %v328, %v326
    %v341 = vpack.c.b16 %v331, %v329
    %v342 = vpack.c.b16 %v332, %v330
    %v343 = vpack.c.b16 %v335, %v333
    %v344 = vpack.c.b16 %v336, %v334
    %353 = vmatprep.subr.bf16.mxu0 %v338
    %354 = vmatpush1.bf16.msra.mxu0 %v337
    %355 = vmatprep.subr.bf16.mxu0 %v340
    %356 = vmatpush1.bf16.msra.mxu0 %v339
    %357 = vmatprep.subr.bf16.mxu0 %v342
    %358 = vmatpush1.bf16.msra.mxu0 %v341
    %359 = vmatprep.subr.bf16.mxu0 %v344
    %360 = vmatpush1.bf16.msra.mxu0 %v343
    %361 = vmatprep.subr.bf16.mxu0 0
    %362 = vmatpush1.bf16.msra.mxu0 0
    %363 = vmatprep.subr.bf16.mxu0 0
    %364 = vmatpush1.bf16.msra.mxu0 0
    %365 = vmatprep.subr.bf16.mxu0 0
    %366 = vmatpush1.bf16.msra.mxu0 0
    %367 = vmatprep.subr.bf16.mxu0 0
    %368 = vmatpush1.bf16.msra.mxu0 0
    %369 = vmatprep.subr.bf16.mxu0 0
    %370 = vmatpush1.bf16.msra.mxu0 0
    %371 = vmatprep.subr.bf16.mxu0 0
    %372 = vmatpush1.bf16.msra.mxu0 0
    %373 = vmatprep.subr.bf16.mxu0 0
    %374 = vmatpush1.bf16.msra.mxu0 0
    %375 = vmatprep.subr.bf16.mxu0 0
    %376 = vmatpush1.bf16.msra.mxu0 0
    %377 = vmatprep.subr.bf16.mxu0 0
    %378 = vmatpush1.bf16.msra.mxu0 0
    %379 = vmatprep.subr.bf16.mxu0 0
    %380 = vmatpush1.bf16.msra.mxu0 0
    %381 = vmatprep.subr.bf16.mxu0 0
    %382 = vmatpush1.bf16.msra.mxu0 0
    %383 = vmatprep.subr.bf16.mxu0 0
    %384 = vmatpush1.bf16.msra.mxu0 0
    %385 = vmatprep.mubr.bf16.mxu0 0
    %386 = vmatmul.mubr.bf16.gmra.mrb[0].mxu0 %v247
    %v387 = vpop.f32.mrb[0].mxu0
    %v388 = vadd.f32 0.0, %v387
    %v389 = vpop.f32.mrb[0].mxu0
    %v390 = vadd.f32 0.0, %v389
    %v391 = vpop.f32.mrb[0].mxu0
    %v392 = vpop.f32.mrb[0].mxu0
    %393 = vdwg.mxu0
    %v394 = vadd.f32 %v169, %v388
    %v395 = vadd.f32 %v170, %v390
    %v396 = vxor.u32 %v394, 2147483648
    %v397 = vxor.u32 %v395, 2147483648
    %v398 = vmul.f32 %v396, 1.442695
    %v399 = vpow.pop %v398
    %v400 = vmul.f32 %v397, 1.442695
    %v401 = vpow.pop %v400
    %v402 = vadd.f32 %v399, 1.0
    %v403 = vadd.f32 %v401, 1.0
    %v404 = vrcp.pop %v402
    %v405 = vmul.f32 1.0, %v404
    %v406 = vrcp.pop %v403
    %v407 = vmul.f32 1.0, %v406
    %v408 = vtanh.pop %v395
    %v409 = vmul.f32 %v405, %v213
    %411 = vrot.lane.b32.xlu0 %v408, 64
    %v412 = vpop.permute.xlu0 %411
    %v414 = vmul.f32 %v405, %v412
    %416 = vrot.lane.b32.xlu0 %v414, 64
    %v417 = vpop.permute.xlu0 %416
    %v419 = vadd.f32 %v409, %v417
    %v420 = vtanh.pop %v419
    %422 = vrot.lane.b32.xlu0 %v420, 64
    %v423 = vpop.permute.xlu0 %422
    %v425 = vmul.f32 %v407, %v423
    %v426 = vpack.c.bf16 %v425, %v425
    %v428 = vsel %vm245, %v426, 0
    %430 = vmatprep.subr.bf16.mxu0 0
    %431 = vmatpush1.bf16.msra.mxu0 %v237
    %432 = vmatprep.subr.bf16.mxu0 0
    %433 = vmatpush1.bf16.msra.mxu0 %v238
    %434 = vmatprep.subr.bf16.mxu0 0
    %435 = vmatpush1.bf16.msra.mxu0 %v239
    %436 = vmatprep.subr.bf16.mxu0 0
    %437 = vmatpush1.bf16.msra.mxu0 %v240
    %438 = vmatprep.subr.bf16.mxu0 0
    %439 = vmatpush1.bf16.msra.mxu0 0
    %440 = vmatprep.subr.bf16.mxu0 0
    %441 = vmatpush1.bf16.msra.mxu0 0
    %442 = vmatprep.subr.bf16.mxu0 0
    %443 = vmatpush1.bf16.msra.mxu0 0
    %444 = vmatprep.subr.bf16.mxu0 0
    %445 = vmatpush1.bf16.msra.mxu0 0
    %446 = vmatprep.subr.bf16.mxu0 0
    %447 = vmatpush1.bf16.msra.mxu0 0
    %448 = vmatprep.subr.bf16.mxu0 0
    %449 = vmatpush1.bf16.msra.mxu0 0
    %450 = vmatprep.subr.bf16.mxu0 0
    %451 = vmatpush1.bf16.msra.mxu0 0
    %452 = vmatprep.subr.bf16.mxu0 0
    %453 = vmatpush1.bf16.msra.mxu0 0
    %454 = vmatprep.subr.bf16.mxu0 0
    %455 = vmatpush1.bf16.msra.mxu0 0
    %456 = vmatprep.subr.bf16.mxu0 0
    %457 = vmatpush1.bf16.msra.mxu0 0
    %458 = vmatprep.subr.bf16.mxu0 0
    %459 = vmatpush1.bf16.msra.mxu0 0
    %460 = vmatprep.subr.bf16.mxu0 0
    %461 = vmatpush1.bf16.msra.mxu0 0
    %462 = vmatprep.mubr.bf16.mxu0 0
    %463 = vmatmul.mubr.bf16.gmra.mrb[0].mxu0 %v428
    %v464 = vpop.f32.mrb[0].mxu0
    %v465 = vadd.f32 %v188, %v464
    %v466 = vpop.f32.mrb[0].mxu0
    %v467 = vpop.f32.mrb[0].mxu0
    %v468 = vpop.f32.mrb[0].mxu0
    %469 = vdwg.mxu0
    %v470 = vpack.c.bf16 %v312, %v312
    %472 = vrot.lane.b32.xlu0 %v470, 64
    %v473 = vpop.permute.xlu0 %472
    %v478 = vunpack.c.l.b16 %v75
    %v479 = vunpack.c.l.b16 %v76
    %v480 = vunpack.c.l.b16 %v77
    %v481 = vunpack.c.l.b16 %v78
    %v482 = vpack.c.b16 %v479, %v478
    %v483 = vpack.c.b16 %v481, %v480
    %vm486 = vcmask 261120
    %v488 = vsel %vm486, %v473, 0
    %490 = vmatprep.subr.bf16.mxu0 0
    %491 = vmatpush1.bf16.msra.mxu0 %v482
    %492 = vmatprep.subr.bf16.mxu0 0
    %493 = vmatpush1.bf16.msra.mxu0 %v483
    %494 = vmatprep.subr.bf16.mxu0 0
    %495 = vmatpush1.bf16.msra.mxu0 0
    %496 = vmatprep.subr.bf16.mxu0 0
    %497 = vmatpush1.bf16.msra.mxu0 0
    %498 = vmatprep.subr.bf16.mxu0 0
    %499 = vmatpush1.bf16.msra.mxu0 0
    %500 = vmatprep.subr.bf16.mxu0 0
    %501 = vmatpush1.bf16.msra.mxu0 0
    %502 = vmatprep.subr.bf16.mxu0 0
    %503 = vmatpush1.bf16.msra.mxu0 0
    %504 = vmatprep.subr.bf16.mxu0 0
    %505 = vmatpush1.bf16.msra.mxu0 0
    %506 = vmatprep.subr.bf16.mxu0 0
    %507 = vmatpush1.bf16.msra.mxu0 0
    %508 = vmatprep.subr.bf16.mxu0 0
    %509 = vmatpush1.bf16.msra.mxu0 0
    %510 = vmatprep.subr.bf16.mxu0 0
    %511 = vmatpush1.bf16.msra.mxu0 0
    %512 = vmatprep.subr.bf16.mxu0 0
    %513 = vmatpush1.bf16.msra.mxu0 0
    %514 = vmatprep.subr.bf16.mxu0 0
    %515 = vmatpush1.bf16.msra.mxu0 0
    %516 = vmatprep.subr.bf16.mxu0 0
    %517 = vmatpush1.bf16.msra.mxu0 0
    %518 = vmatprep.subr.bf16.mxu0 0
    %519 = vmatpush1.bf16.msra.mxu0 0
    %520 = vmatprep.subr.bf16.mxu0 0
    %521 = vmatpush1.bf16.msra.mxu0 0
    %522 = vmatprep.mubr.bf16.mxu0 0
    %523 = vmatmul.mubr.bf16.gmra.mrb[0].mxu0 %v488
    %v524 = vpop.f32.mrb[0].mxu0
    %v525 = vadd.f32 0.0, %v524
    %v526 = vpop.f32.mrb[0].mxu0
    %v527 = vpop.f32.mrb[0].mxu0
    %v528 = vpop.f32.mrb[0].mxu0
    %529 = vdwg.mxu0
    %v530 = vadd.f32 %v465, %v525
    %v531 = vxor.u32 %v530, 2147483648
    %v532 = vmul.f32 %v531, 1.442695
    %v533 = vpow.pop %v532
    %v534 = vadd.f32 %v533, 1.0
    %v535 = vrcp.pop %v534
    %v536 = vmul.f32 1.0, %v535
    %v537 = vtanh.pop %v530
    %v538 = vmul.f32 %v536, %v306
    %540 = vrot.lane.b32.xlu0 %v537, 32
    %v541 = vpop.permute.xlu0 %540
    %v543 = vmul.f32 %v536, %v541
    %545 = vrot.lane.b32.xlu0 %v543, 32
    %v546 = vpop.permute.xlu0 %545
    %v548 = vadd.f32 %v538, %v546
    %v549 = vtanh.pop %v548
    %551 = vrot.lane.b32.xlu0 %v549, 32
    %v552 = vpop.permute.xlu0 %551
    %v554 = vmul.f32 %v536, %v552
    %555 = vmatprep.subr.bf16.mxu0 %v338
    %556 = vmatpush1.bf16.msra.mxu0 %v337
    %557 = vmatprep.subr.bf16.mxu0 %v340
    %558 = vmatpush1.bf16.msra.mxu0 %v339
    %559 = vmatprep.subr.bf16.mxu0 %v342
    %560 = vmatpush1.bf16.msra.mxu0 %v341
    %561 = vmatprep.subr.bf16.mxu0 %v344
    %562 = vmatpush1.bf16.msra.mxu0 %v343
    %563 = vmatprep.subr.bf16.mxu0 0
    %564 = vmatpush1.bf16.msra.mxu0 0
    %565 = vmatprep.subr.bf16.mxu0 0
    %566 = vmatpush1.bf16.msra.mxu0 0
    %567 = vmatprep.subr.bf16.mxu0 0
    %568 = vmatpush1.bf16.msra.mxu0 0
    %569 = vmatprep.subr.bf16.mxu0 0
    %570 = vmatpush1.bf16.msra.mxu0 0
    %571 = vmatprep.subr.bf16.mxu0 0
    %572 = vmatpush1.bf16.msra.mxu0 0
    %573 = vmatprep.subr.bf16.mxu0 0
    %574 = vmatpush1.bf16.msra.mxu0 0
    %575 = vmatprep.subr.bf16.mxu0 0
    %576 = vmatpush1.bf16.msra.mxu0 0
    %577 = vmatprep.subr.bf16.mxu0 0
    %578 = vmatpush1.bf16.msra.mxu0 0
    %579 = vmatprep.subr.bf16.mxu0 0
    %580 = vmatpush1.bf16.msra.mxu0 0
    %581 = vmatprep.subr.bf16.mxu0 0
    %582 = vmatpush1.bf16.msra.mxu0 0
    %583 = vmatprep.subr.bf16.mxu0 0
    %584 = vmatpush1.bf16.msra.mxu0 0
    %585 = vmatprep.subr.bf16.mxu0 0
    %586 = vmatpush1.bf16.msra.mxu0 0
    %587 = vmatprep.mubr.bf16.mxu0 0
    %588 = vmatmul.mubr.bf16.gmra.mrb[0].mxu0 %v428
    %v589 = vpop.f32.mrb[0].mxu0
    %v590 = vadd.f32 0.0, %v589
    %v591 = vpop.f32.mrb[0].mxu0
    %v592 = vadd.f32 0.0, %v591
    %v593 = vpop.f32.mrb[0].mxu0
    %v594 = vpop.f32.mrb[0].mxu0
    %595 = vdwg.mxu0
    %v596 = vadd.f32 %v171, %v590
    %v597 = vadd.f32 %v172, %v592
    %v598 = vxor.u32 %v596, 2147483648
    %v599 = vxor.u32 %v597, 2147483648
    %v600 = vmul.f32 %v598, 1.442695
    %v601 = vpow.pop %v600
    %v602 = vmul.f32 %v599, 1.442695
    %v603 = vpow.pop %v602
    %v604 = vadd.f32 %v601, 1.0
    %v605 = vadd.f32 %v603, 1.0
    %v606 = vrcp.pop %v604
    %v607 = vmul.f32 1.0, %v606
    %v608 = vrcp.pop %v605
    %v609 = vmul.f32 1.0, %v608
    %v610 = vtanh.pop %v597
    %v611 = vmul.f32 %v607, %v419
    %613 = vrot.lane.b32.xlu0 %v610, 64
    %v614 = vpop.permute.xlu0 %613
    %v616 = vmul.f32 %v607, %v614
    %618 = vrot.lane.b32.xlu0 %v616, 64
    %v619 = vpop.permute.xlu0 %618
    %v621 = vadd.f32 %v611, %v619
    %v622 = vtanh.pop %v621
    %624 = vrot.lane.b32.xlu0 %v622, 64
    %v625 = vpop.permute.xlu0 %624
    %v627 = vmul.f32 %v609, %v625
    %v628 = vpack.c.bf16 %v627, %v627
    %v630 = vsel %vm245, %v628, 0
    %632 = vmatprep.subr.bf16.mxu0 0
    %633 = vmatpush1.bf16.msra.mxu0 %v237
    %634 = vmatprep.subr.bf16.mxu0 0
    %635 = vmatpush1.bf16.msra.mxu0 %v238
    %636 = vmatprep.subr.bf16.mxu0 0
    %637 = vmatpush1.bf16.msra.mxu0 %v239
    %638 = vmatprep.subr.bf16.mxu0 0
    %639 = vmatpush1.bf16.msra.mxu0 %v240
    %640 = vmatprep.subr.bf16.mxu0 0
    %641 = vmatpush1.bf16.msra.mxu0 0
    %642 = vmatprep.subr.bf16.mxu0 0
    %643 = vmatpush1.bf16.msra.mxu0 0
    %644 = vmatprep.subr.bf16.mxu0 0
    %645 = vmatpush1.bf16.msra.mxu0 0
    %646 = vmatprep.subr.bf16.mxu0 0
    %647 = vmatpush1.bf16.msra.mxu0 0
    %648 = vmatprep.subr.bf16.mxu0 0
    %649 = vmatpush1.bf16.msra.mxu0 0
    %650 = vmatprep.subr.bf16.mxu0 0
    %651 = vmatpush1.bf16.msra.mxu0 0
    %652 = vmatprep.subr.bf16.mxu0 0
    %653 = vmatpush1.bf16.msra.mxu0 0
    %654 = vmatprep.subr.bf16.mxu0 0
    %655 = vmatpush1.bf16.msra.mxu0 0
    %656 = vmatprep.subr.bf16.mxu0 0
    %657 = vmatpush1.bf16.msra.mxu0 0
    %658 = vmatprep.subr.bf16.mxu0 0
    %659 = vmatpush1.bf16.msra.mxu0 0
    %660 = vmatprep.subr.bf16.mxu0 0
    %661 = vmatpush1.bf16.msra.mxu0 0
    %662 = vmatprep.subr.bf16.mxu0 0
    %663 = vmatpush1.bf16.msra.mxu0 0
    %664 = vmatprep.mubr.bf16.mxu0 0
    %665 = vmatmul.mubr.bf16.gmra.mrb[0].mxu0 %v630
    %v666 = vpop.f32.mrb[0].mxu0
    %v667 = vadd.f32 %v188, %v666
    %v668 = vpop.f32.mrb[0].mxu0
    %v669 = vpop.f32.mrb[0].mxu0
    %v670 = vpop.f32.mrb[0].mxu0
    %671 = vdwg.mxu0
    %v672 = vpack.c.bf16 %v554, %v554
    %674 = vrot.lane.b32.xlu0 %v672, 64
    %v675 = vpop.permute.xlu0 %674
    %v677 = vsel %vm486, %v675, 0
    %679 = vmatprep.subr.bf16.mxu0 0
    %680 = vmatpush1.bf16.msra.mxu0 %v482
    %681 = vmatprep.subr.bf16.mxu0 0
    %682 = vmatpush1.bf16.msra.mxu0 %v483
    %683 = vmatprep.subr.bf16.mxu0 0
    %684 = vmatpush1.bf16.msra.mxu0 0
    %685 = vmatprep.subr.bf16.mxu0 0
    %686 = vmatpush1.bf16.msra.mxu0 0
    %687 = vmatprep.subr.bf16.mxu0 0
    %688 = vmatpush1.bf16.msra.mxu0 0
    %689 = vmatprep.subr.bf16.mxu0 0
    %690 = vmatpush1.bf16.msra.mxu0 0
    %691 = vmatprep.subr.bf16.mxu0 0
    %692 = vmatpush1.bf16.msra.mxu0 0
    %693 = vmatprep.subr.bf16.mxu0 0
    %694 = vmatpush1.bf16.msra.mxu0 0
    %695 = vmatprep.subr.bf16.mxu0 0
    %696 = vmatpush1.bf16.msra.mxu0 0
    %697 = vmatprep.subr.bf16.mxu0 0
    %698 = vmatpush1.bf16.msra.mxu0 0
    %699 = vmatprep.subr.bf16.mxu0 0
    %700 = vmatpush1.bf16.msra.mxu0 0
    %701 = vmatprep.subr.bf16.mxu0 0
    %702 = vmatpush1.bf16.msra.mxu0 0
    %703 = vmatprep.subr.bf16.mxu0 0
    %704 = vmatpush1.bf16.msra.mxu0 0
    %705 = vmatprep.subr.bf16.mxu0 0
    %706 = vmatpush1.bf16.msra.mxu0 0
    %707 = vmatprep.subr.bf16.mxu0 0
    %708 = vmatpush1.bf16.msra.mxu0 0
    %709 = vmatprep.subr.bf16.mxu0 0
    %710 = vmatpush1.bf16.msra.mxu0 0
    %711 = vmatprep.mubr.bf16.mxu0 0
    %712 = vmatmul.mubr.bf16.gmra.mrb[0].mxu0 %v677
    %v713 = vpop.f32.mrb[0].mxu0
    %v714 = vadd.f32 0.0, %v713
    %v715 = vpop.f32.mrb[0].mxu0
    %v716 = vpop.f32.mrb[0].mxu0
    %v717 = vpop.f32.mrb[0].mxu0
    %718 = vdwg.mxu0
    %v719 = vadd.f32 %v667, %v714
    %v720 = vxor.u32 %v719, 2147483648
    %v721 = vmul.f32 %v720, 1.442695
    %v722 = vpow.pop %v721
    %v723 = vadd.f32 %v722, 1.0
    %v724 = vrcp.pop %v723
    %v725 = vmul.f32 1.0, %v724
    %v726 = vtanh.pop %v719
    %v727 = vmul.f32 %v725, %v548
    %729 = vrot.lane.b32.xlu0 %v726, 32
    %v730 = vpop.permute.xlu0 %729
    %v732 = vmul.f32 %v725, %v730
    %734 = vrot.lane.b32.xlu0 %v732, 32
    %v735 = vpop.permute.xlu0 %734
    %v737 = vadd.f32 %v727, %v735
    %v738 = vtanh.pop %v737
    %740 = vrot.lane.b32.xlu0 %v738, 32
    %v741 = vpop.permute.xlu0 %740
    %v743 = vmul.f32 %v725, %v741
    %744 = vmatprep.subr.bf16.mxu0 %v338
    %745 = vmatpush1.bf16.msra.mxu0 %v337
    %746 = vmatprep.subr.bf16.mxu0 %v340
    %747 = vmatpush1.bf16.msra.mxu0 %v339
    %748 = vmatprep.subr.bf16.mxu0 %v342
    %749 = vmatpush1.bf16.msra.mxu0 %v341
    %750 = vmatprep.subr.bf16.mxu0 %v344
    %751 = vmatpush1.bf16.msra.mxu0 %v343
    %752 = vmatprep.subr.bf16.mxu0 0
    %753 = vmatpush1.bf16.msra.mxu0 0
    %754 = vmatprep.subr.bf16.mxu0 0
    %755 = vmatpush1.bf16.msra.mxu0 0
    %756 = vmatprep.subr.bf16.mxu0 0
    %757 = vmatpush1.bf16.msra.mxu0 0
    %758 = vmatprep.subr.bf16.mxu0 0
    %759 = vmatpush1.bf16.msra.mxu0 0
    %760 = vmatprep.subr.bf16.mxu0 0
    %761 = vmatpush1.bf16.msra.mxu0 0
    %762 = vmatprep.subr.bf16.mxu0 0
    %763 = vmatpush1.bf16.msra.mxu0 0
    %764 = vmatprep.subr.bf16.mxu0 0
    %765 = vmatpush1.bf16.msra.mxu0 0
    %766 = vmatprep.subr.bf16.mxu0 0
    %767 = vmatpush1.bf16.msra.mxu0 0
    %768 = vmatprep.subr.bf16.mxu0 0
    %769 = vmatpush1.bf16.msra.mxu0 0
    %770 = vmatprep.subr.bf16.mxu0 0
    %771 = vmatpush1.bf16.msra.mxu0 0
    %772 = vmatprep.subr.bf16.mxu0 0
    %773 = vmatpush1.bf16.msra.mxu0 0
    %774 = vmatprep.subr.bf16.mxu0 0
    %775 = vmatpush1.bf16.msra.mxu0 0
    %776 = vmatprep.mubr.bf16.mxu0 0
    %777 = vmatmul.mubr.bf16.gmra.mrb[0].mxu0 %v630
    %v778 = vpop.f32.mrb[0].mxu0
    %v779 = vadd.f32 0.0, %v778
    %v780 = vpop.f32.mrb[0].mxu0
    %v781 = vadd.f32 0.0, %v780
    %v782 = vpop.f32.mrb[0].mxu0
    %v783 = vpop.f32.mrb[0].mxu0
    %784 = vdwg.mxu0
    %v785 = vadd.f32 %v173, %v779
    %v786 = vadd.f32 %v174, %v781
    %v787 = vxor.u32 %v785, 2147483648
    %v788 = vxor.u32 %v786, 2147483648
    %v789 = vmul.f32 %v787, 1.442695
    %v790 = vpow.pop %v789
    %v791 = vmul.f32 %v788, 1.442695
    %v792 = vpow.pop %v791
    %v793 = vadd.f32 %v790, 1.0
    %v794 = vadd.f32 %v792, 1.0
    %v795 = vrcp.pop %v793
    %v796 = vmul.f32 1.0, %v795
    %v797 = vrcp.pop %v794
    %v798 = vmul.f32 1.0, %v797
    %v799 = vtanh.pop %v786
    %v800 = vmul.f32 %v796, %v621
    %802 = vrot.lane.b32.xlu0 %v799, 64
    %v803 = vpop.permute.xlu0 %802
    %v805 = vmul.f32 %v796, %v803
    %807 = vrot.lane.b32.xlu0 %v805, 64
    %v808 = vpop.permute.xlu0 %807
    %v810 = vadd.f32 %v800, %v808
    %v811 = vtanh.pop %v810
    %813 = vrot.lane.b32.xlu0 %v811, 64
    %v814 = vpop.permute.xlu0 %813
    %v816 = vmul.f32 %v798, %v814
    %v817 = vpack.c.bf16 %v816, %v816
    %v819 = vsel %vm245, %v817, 0
    %821 = vmatprep.subr.bf16.mxu0 0
    %822 = vmatpush1.bf16.msra.mxu0 %v237
    %823 = vmatprep.subr.bf16.mxu0 0
    %824 = vmatpush1.bf16.msra.mxu0 %v238
    %825 = vmatprep.subr.bf16.mxu0 0
    %826 = vmatpush1.bf16.msra.mxu0 %v239
    %827 = vmatprep.subr.bf16.mxu0 0
    %828 = vmatpush1.bf16.msra.mxu0 %v240
    %829 = vmatprep.subr.bf16.mxu0 0
    %830 = vmatpush1.bf16.msra.mxu0 0
    %831 = vmatprep.subr.bf16.mxu0 0
    %832 = vmatpush1.bf16.msra.mxu0 0
    %833 = vmatprep.subr.bf16.mxu0 0
    %834 = vmatpush1.bf16.msra.mxu0 0
    %835 = vmatprep.subr.bf16.mxu0 0
    %836 = vmatpush1.bf16.msra.mxu0 0
    %837 = vmatprep.subr.bf16.mxu0 0
    %838 = vmatpush1.bf16.msra.mxu0 0
    %839 = vmatprep.subr.bf16.mxu0 0
    %840 = vmatpush1.bf16.msra.mxu0 0
    %841 = vmatprep.subr.bf16.mxu0 0
    %842 = vmatpush1.bf16.msra.mxu0 0
    %843 = vmatprep.subr.bf16.mxu0 0
    %844 = vmatpush1.bf16.msra.mxu0 0
    %845 = vmatprep.subr.bf16.mxu0 0
    %846 = vmatpush1.bf16.msra.mxu0 0
    %847 = vmatprep.subr.bf16.mxu0 0
    %848 = vmatpush1.bf16.msra.mxu0 0
    %849 = vmatprep.subr.bf16.mxu0 0
    %850 = vmatpush1.bf16.msra.mxu0 0
    %851 = vmatprep.subr.bf16.mxu0 0
    %852 = vmatpush1.bf16.msra.mxu0 0
    %853 = vmatprep.mubr.bf16.mxu0 0
    %854 = vmatmul.mubr.bf16.gmra.mrb[0].mxu0 %v819
    %v855 = vpop.f32.mrb[0].mxu0
    %v856 = vadd.f32 %v188, %v855
    %v857 = vpop.f32.mrb[0].mxu0
    %v858 = vpop.f32.mrb[0].mxu0
    %v859 = vpop.f32.mrb[0].mxu0
    %860 = vdwg.mxu0
    %v861 = vpack.c.bf16 %v743, %v743
    %863 = vrot.lane.b32.xlu0 %v861, 64
    %v864 = vpop.permute.xlu0 %863
    %v866 = vsel %vm486, %v864, 0
    %868 = vmatprep.subr.bf16.mxu0 0
    %869 = vmatpush1.bf16.msra.mxu0 %v482
    %870 = vmatprep.subr.bf16.mxu0 0
    %871 = vmatpush1.bf16.msra.mxu0 %v483
    %872 = vmatprep.subr.bf16.mxu0 0
    %873 = vmatpush1.bf16.msra.mxu0 0
    %874 = vmatprep.subr.bf16.mxu0 0
    %875 = vmatpush1.bf16.msra.mxu0 0
    %876 = vmatprep.subr.bf16.mxu0 0
    %877 = vmatpush1.bf16.msra.mxu0 0
    %878 = vmatprep.subr.bf16.mxu0 0
    %879 = vmatpush1.bf16.msra.mxu0 0
    %880 = vmatprep.subr.bf16.mxu0 0
    %881 = vmatpush1.bf16.msra.mxu0 0
    %882 = vmatprep.subr.bf16.mxu0 0
    %883 = vmatpush1.bf16.msra.mxu0 0
    %884 = vmatprep.subr.bf16.mxu0 0
    %885 = vmatpush1.bf16.msra.mxu0 0
    %886 = vmatprep.subr.bf16.mxu0 0
    %887 = vmatpush1.bf16.msra.mxu0 0
    %888 = vmatprep.subr.bf16.mxu0 0
    %889 = vmatpush1.bf16.msra.mxu0 0
    %890 = vmatprep.subr.bf16.mxu0 0
    %891 = vmatpush1.bf16.msra.mxu0 0
    %892 = vmatprep.subr.bf16.mxu0 0
    %893 = vmatpush1.bf16.msra.mxu0 0
    %894 = vmatprep.subr.bf16.mxu0 0
    %895 = vmatpush1.bf16.msra.mxu0 0
    %896 = vmatprep.subr.bf16.mxu0 0
    %897 = vmatpush1.bf16.msra.mxu0 0
    %898 = vmatprep.subr.bf16.mxu0 0
    %899 = vmatpush1.bf16.msra.mxu0 0
    %900 = vmatprep.mubr.bf16.mxu0 0
    %901 = vmatmul.mubr.bf16.gmra.mrb[0].mxu0 %v866
    %v902 = vpop.f32.mrb[0].mxu0
    %v903 = vadd.f32 0.0, %v902
    %v904 = vpop.f32.mrb[0].mxu0
    %v905 = vpop.f32.mrb[0].mxu0
    %v906 = vpop.f32.mrb[0].mxu0
    %907 = vdwg.mxu0
    %v908 = vadd.f32 %v856, %v903
    %v909 = vxor.u32 %v908, 2147483648
    %v910 = vmul.f32 %v909, 1.442695
    %v911 = vpow.pop %v910
    %v912 = vadd.f32 %v911, 1.0
    %v913 = vrcp.pop %v912
    %v914 = vmul.f32 1.0, %v913
    %v915 = vtanh.pop %v908
    %v916 = vmul.f32 %v914, %v737
    %918 = vrot.lane.b32.xlu0 %v915, 32
    %v919 = vpop.permute.xlu0 %918
    %v921 = vmul.f32 %v914, %v919
    %923 = vrot.lane.b32.xlu0 %v921, 32
    %v924 = vpop.permute.xlu0 %923
    %v926 = vadd.f32 %v916, %v924
    %v927 = vtanh.pop %v926
    %929 = vrot.lane.b32.xlu0 %v927, 32
    %v930 = vpop.permute.xlu0 %929
    %v932 = vmul.f32 %v914, %v930
    %933 = vmatprep.subr.bf16.mxu0 %v338
    %934 = vmatpush1.bf16.msra.mxu0 %v337
    %935 = vmatprep.subr.bf16.mxu0 %v340
    %936 = vmatpush1.bf16.msra.mxu0 %v339
    %937 = vmatprep.subr.bf16.mxu0 %v342
    %938 = vmatpush1.bf16.msra.mxu0 %v341
    %939 = vmatprep.subr.bf16.mxu0 %v344
    %940 = vmatpush1.bf16.msra.mxu0 %v343
    %941 = vmatprep.subr.bf16.mxu0 0
    %942 = vmatpush1.bf16.msra.mxu0 0
    %943 = vmatprep.subr.bf16.mxu0 0
    %944 = vmatpush1.bf16.msra.mxu0 0
    %945 = vmatprep.subr.bf16.mxu0 0
    %946 = vmatpush1.bf16.msra.mxu0 0
    %947 = vmatprep.subr.bf16.mxu0 0
    %948 = vmatpush1.bf16.msra.mxu0 0
    %949 = vmatprep.subr.bf16.mxu0 0
    %950 = vmatpush1.bf16.msra.mxu0 0
    %951 = vmatprep.subr.bf16.mxu0 0
    %952 = vmatpush1.bf16.msra.mxu0 0
    %953 = vmatprep.subr.bf16.mxu0 0
    %954 = vmatpush1.bf16.msra.mxu0 0
    %955 = vmatprep.subr.bf16.mxu0 0
    %956 = vmatpush1.bf16.msra.mxu0 0
    %957 = vmatprep.subr.bf16.mxu0 0
    %958 = vmatpush1.bf16.msra.mxu0 0
    %959 = vmatprep.subr.bf16.mxu0 0
    %960 = vmatpush1.bf16.msra.mxu0 0
    %961 = vmatprep.subr.bf16.mxu0 0
    %962 = vmatpush1.bf16.msra.mxu0 0
    %963 = vmatprep.subr.bf16.mxu0 0
    %964 = vmatpush1.bf16.msra.mxu0 0
    %965 = vmatprep.mubr.bf16.mxu0 0
    %966 = vmatmul.mubr.bf16.gmra.mrb[0].mxu0 %v819
    %v967 = vpop.f32.mrb[0].mxu0
    %v968 = vadd.f32 0.0, %v967
    %v969 = vpop.f32.mrb[0].mxu0
    %v970 = vadd.f32 0.0, %v969
    %v971 = vpop.f32.mrb[0].mxu0
    %v972 = vpop.f32.mrb[0].mxu0
    %973 = vdwg.mxu0
    %v974 = vadd.f32 %v175, %v968
    %v975 = vadd.f32 %v176, %v970
    %v976 = vxor.u32 %v974, 2147483648
    %v977 = vxor.u32 %v975, 2147483648
    %v978 = vmul.f32 %v976, 1.442695
    %v979 = vpow.pop %v978
    %v980 = vmul.f32 %v977, 1.442695
    %v981 = vpow.pop %v980
    %v982 = vadd.f32 %v979, 1.0
    %v983 = vadd.f32 %v981, 1.0
    %v984 = vrcp.pop %v982
    %v985 = vmul.f32 1.0, %v984
    %v986 = vrcp.pop %v983
    %v987 = vmul.f32 1.0, %v986
    %v988 = vtanh.pop %v975
    %v989 = vmul.f32 %v985, %v810
    %991 = vrot.lane.b32.xlu0 %v988, 64
    %v992 = vpop.permute.xlu0 %991
    %v994 = vmul.f32 %v985, %v992
    %996 = vrot.lane.b32.xlu0 %v994, 64
    %v997 = vpop.permute.xlu0 %996
    %v999 = vadd.f32 %v989, %v997
    %v1000 = vtanh.pop %v999
    %1002 = vrot.lane.b32.xlu0 %v1000, 64
    %v1003 = vpop.permute.xlu0 %1002
    %v1005 = vmul.f32 %v987, %v1003
    %v1006 = vpack.c.bf16 %v1005, %v1005
    %v1008 = vsel %vm245, %v1006, 0
    %1010 = vmatprep.subr.bf16.mxu0 0
    %1011 = vmatpush1.bf16.msra.mxu0 %v237
    %1012 = vmatprep.subr.bf16.mxu0 0
    %1013 = vmatpush1.bf16.msra.mxu0 %v238
    %1014 = vmatprep.subr.bf16.mxu0 0
    %1015 = vmatpush1.bf16.msra.mxu0 %v239
    %1016 = vmatprep.subr.bf16.mxu0 0
    %1017 = vmatpush1.bf16.msra.mxu0 %v240
    %1018 = vmatprep.subr.bf16.mxu0 0
    %1019 = vmatpush1.bf16.msra.mxu0 0
    %1020 = vmatprep.subr.bf16.mxu0 0
    %1021 = vmatpush1.bf16.msra.mxu0 0
    %1022 = vmatprep.subr.bf16.mxu0 0
    %1023 = vmatpush1.bf16.msra.mxu0 0
    %1024 = vmatprep.subr.bf16.mxu0 0
    %1025 = vmatpush1.bf16.msra.mxu0 0
    %1026 = vmatprep.subr.bf16.mxu0 0
    %1027 = vmatpush1.bf16.msra.mxu0 0
    %1028 = vmatprep.subr.bf16.mxu0 0
    %1029 = vmatpush1.bf16.msra.mxu0 0
    %1030 = vmatprep.subr.bf16.mxu0 0
    %1031 = vmatpush1.bf16.msra.mxu0 0
    %1032 = vmatprep.subr.bf16.mxu0 0
    %1033 = vmatpush1.bf16.msra.mxu0 0
    %1034 = vmatprep.subr.bf16.mxu0 0
    %1035 = vmatpush1.bf16.msra.mxu0 0
    %1036 = vmatprep.subr.bf16.mxu0 0
    %1037 = vmatpush1.bf16.msra.mxu0 0
    %1038 = vmatprep.subr.bf16.mxu0 0
    %1039 = vmatpush1.bf16.msra.mxu0 0
    %1040 = vmatprep.subr.bf16.mxu0 0
    %1041 = vmatpush1.bf16.msra.mxu0 0
    %1042 = vmatprep.mubr.bf16.mxu0 0
    %1043 = vmatmul.mubr.bf16.gmra.mrb[0].mxu0 %v1008
    %v1044 = vpop.f32.mrb[0].mxu0
    %v1045 = vadd.f32 %v188, %v1044
    %v1046 = vpop.f32.mrb[0].mxu0
    %v1047 = vpop.f32.mrb[0].mxu0
    %v1048 = vpop.f32.mrb[0].mxu0
    %1049 = vdwg.mxu0
    %v1050 = vpack.c.bf16 %v932, %v932
    %1052 = vrot.lane.b32.xlu0 %v1050, 64
    %v1053 = vpop.permute.xlu0 %1052
    %v1055 = vsel %vm486, %v1053, 0
    %1057 = vmatprep.subr.bf16.mxu0 0
    %1058 = vmatpush1.bf16.msra.mxu0 %v482
    %1059 = vmatprep.subr.bf16.mxu0 0
    %1060 = vmatpush1.bf16.msra.mxu0 %v483
    %1061 = vmatprep.subr.bf16.mxu0 0
    %1062 = vmatpush1.bf16.msra.mxu0 0
    %1063 = vmatprep.subr.bf16.mxu0 0
    %1064 = vmatpush1.bf16.msra.mxu0 0
    %1065 = vmatprep.subr.bf16.mxu0 0
    %1066 = vmatpush1.bf16.msra.mxu0 0
    %1067 = vmatprep.subr.bf16.mxu0 0
    %1068 = vmatpush1.bf16.msra.mxu0 0
    %1069 = vmatprep.subr.bf16.mxu0 0
    %1070 = vmatpush1.bf16.msra.mxu0 0
    %1071 = vmatprep.subr.bf16.mxu0 0
    %1072 = vmatpush1.bf16.msra.mxu0 0
    %1073 = vmatprep.subr.bf16.mxu0 0
    %1074 = vmatpush1.bf16.msra.mxu0 0
    %1075 = vmatprep.subr.bf16.mxu0 0
    %1076 = vmatpush1.bf16.msra.mxu0 0
    %1077 = vmatprep.subr.bf16.mxu0 0
    %1078 = vmatpush1.bf16.msra.mxu0 0
    %1079 = vmatprep.subr.bf16.mxu0 0
    %1080 = vmatpush1.bf16.msra.mxu0 0
    %1081 = vmatprep.subr.bf16.mxu0 0
    %1082 = vmatpush1.bf16.msra.mxu0 0
    %1083 = vmatprep.subr.bf16.mxu0 0
    %1084 = vmatpush1.bf16.msra.mxu0 0
    %1085 = vmatprep.subr.bf16.mxu0 0
    %1086 = vmatpush1.bf16.msra.mxu0 0
    %1087 = vmatprep.subr.bf16.mxu0 0
    %1088 = vmatpush1.bf16.msra.mxu0 0
    %1089 = vmatprep.mubr.bf16.mxu0 0
    %1090 = vmatmul.mubr.bf16.gmra.mrb[0].mxu0 %v1055
    %v1091 = vpop.f32.mrb[0].mxu0
    %v1092 = vadd.f32 0.0, %v1091
    %v1093 = vpop.f32.mrb[0].mxu0
    %v1094 = vpop.f32.mrb[0].mxu0
    %v1095 = vpop.f32.mrb[0].mxu0
    %1096 = vdwg.mxu0
    %v1097 = vadd.f32 %v1045, %v1092
    %v1098 = vxor.u32 %v1097, 2147483648
    %v1099 = vmul.f32 %v1098, 1.442695
    %v1100 = vpow.pop %v1099
    %v1101 = vadd.f32 %v1100, 1.0
    %v1102 = vrcp.pop %v1101
    %v1103 = vmul.f32 1.0, %v1102
    %v1104 = vtanh.pop %v1097
    %v1105 = vmul.f32 %v1103, %v926
    %1107 = vrot.lane.b32.xlu0 %v1104, 32
    %v1108 = vpop.permute.xlu0 %1107
    %v1110 = vmul.f32 %v1103, %v1108
    %1112 = vrot.lane.b32.xlu0 %v1110, 32
    %v1113 = vpop.permute.xlu0 %1112
    %v1115 = vadd.f32 %v1105, %v1113
    %v1116 = vtanh.pop %v1115
    %1118 = vrot.lane.b32.xlu0 %v1116, 32
    %v1119 = vpop.permute.xlu0 %1118
    %v1121 = vmul.f32 %v1103, %v1119
    %1122 = vmatprep.subr.bf16.mxu0 %v338
    %1123 = vmatpush1.bf16.msra.mxu0 %v337
    %1124 = vmatprep.subr.bf16.mxu0 %v340
    %1125 = vmatpush1.bf16.msra.mxu0 %v339
    %1126 = vmatprep.subr.bf16.mxu0 %v342
    %1127 = vmatpush1.bf16.msra.mxu0 %v341
    %1128 = vmatprep.subr.bf16.mxu0 %v344
    %1129 = vmatpush1.bf16.msra.mxu0 %v343
    %1130 = vmatprep.subr.bf16.mxu0 0
    %1131 = vmatpush1.bf16.msra.mxu0 0
    %1132 = vmatprep.subr.bf16.mxu0 0
    %1133 = vmatpush1.bf16.msra.mxu0 0
    %1134 = vmatprep.subr.bf16.mxu0 0
    %1135 = vmatpush1.bf16.msra.mxu0 0
    %1136 = vmatprep.subr.bf16.mxu0 0
    %1137 = vmatpush1.bf16.msra.mxu0 0
    %1138 = vmatprep.subr.bf16.mxu0 0
    %1139 = vmatpush1.bf16.msra.mxu0 0
    %1140 = vmatprep.subr.bf16.mxu0 0
    %1141 = vmatpush1.bf16.msra.mxu0 0
    %1142 = vmatprep.subr.bf16.mxu0 0
    %1143 = vmatpush1.bf16.msra.mxu0 0
    %1144 = vmatprep.subr.bf16.mxu0 0
    %1145 = vmatpush1.bf16.msra.mxu0 0
    %1146 = vmatprep.subr.bf16.mxu0 0
    %1147 = vmatpush1.bf16.msra.mxu0 0
    %1148 = vmatprep.subr.bf16.mxu0 0
    %1149 = vmatpush1.bf16.msra.mxu0 0
    %1150 = vmatprep.subr.bf16.mxu0 0
    %1151 = vmatpush1.bf16.msra.mxu0 0
    %1152 = vmatprep.subr.bf16.mxu0 0
    %1153 = vmatpush1.bf16.msra.mxu0 0
    %1154 = vmatprep.mubr.bf16.mxu0 0
    %1155 = vmatmul.mubr.bf16.gmra.mrb[0].mxu0 %v1008
    %v1156 = vpop.f32.mrb[0].mxu0
    %v1157 = vadd.f32 0.0, %v1156
    %v1158 = vpop.f32.mrb[0].mxu0
    %v1159 = vadd.f32 0.0, %v1158
    %v1160 = vpop.f32.mrb[0].mxu0
    %v1161 = vpop.f32.mrb[0].mxu0
    %1162 = vdwg.mxu0
    %v1163 = vadd.f32 %v177, %v1157
    %v1164 = vadd.f32 %v178, %v1159
    %v1165 = vxor.u32 %v1163, 2147483648
    %v1166 = vxor.u32 %v1164, 2147483648
    %v1167 = vmul.f32 %v1165, 1.442695
    %v1168 = vpow.pop %v1167
    %v1169 = vmul.f32 %v1166, 1.442695
    %v1170 = vpow.pop %v1169
    %v1171 = vadd.f32 %v1168, 1.0
    %v1172 = vadd.f32 %v1170, 1.0
    %v1173 = vrcp.pop %v1171
    %v1174 = vmul.f32 1.0, %v1173
    %v1175 = vrcp.pop %v1172
    %v1176 = vmul.f32 1.0, %v1175
    %v1177 = vtanh.pop %v1164
    %v1178 = vmul.f32 %v1174, %v999
    %1180 = vrot.lane.b32.xlu0 %v1177, 64
    %v1181 = vpop.permute.xlu0 %1180
    %v1183 = vmul.f32 %v1174, %v1181
    %1185 = vrot.lane.b32.xlu0 %v1183, 64
    %v1186 = vpop.permute.xlu0 %1185
    %v1188 = vadd.f32 %v1178, %v1186
    %v1189 = vtanh.pop %v1188
    %1191 = vrot.lane.b32.xlu0 %v1189, 64
    %v1192 = vpop.permute.xlu0 %1191
    %v1194 = vmul.f32 %v1176, %v1192
    %v1195 = vpack.c.bf16 %v1194, %v1194
    %v1197 = vsel %vm245, %v1195, 0
    %1199 = vmatprep.subr.bf16.mxu0 0
    %1200 = vmatpush1.bf16.msra.mxu0 %v237
    %1201 = vmatprep.subr.bf16.mxu0 0
    %1202 = vmatpush1.bf16.msra.mxu0 %v238
    %1203 = vmatprep.subr.bf16.mxu0 0
    %1204 = vmatpush1.bf16.msra.mxu0 %v239
    %1205 = vmatprep.subr.bf16.mxu0 0
    %1206 = vmatpush1.bf16.msra.mxu0 %v240
    %1207 = vmatprep.subr.bf16.mxu0 0
    %1208 = vmatpush1.bf16.msra.mxu0 0
    %1209 = vmatprep.subr.bf16.mxu0 0
    %1210 = vmatpush1.bf16.msra.mxu0 0
    %1211 = vmatprep.subr.bf16.mxu0 0
    %1212 = vmatpush1.bf16.msra.mxu0 0
    %1213 = vmatprep.subr.bf16.mxu0 0
    %1214 = vmatpush1.bf16.msra.mxu0 0
    %1215 = vmatprep.subr.bf16.mxu0 0
    %1216 = vmatpush1.bf16.msra.mxu0 0
    %1217 = vmatprep.subr.bf16.mxu0 0
    %1218 = vmatpush1.bf16.msra.mxu0 0
    %1219 = vmatprep.subr.bf16.mxu0 0
    %1220 = vmatpush1.bf16.msra.mxu0 0
    %1221 = vmatprep.subr.bf16.mxu0 0
    %1222 = vmatpush1.bf16.msra.mxu0 0
    %1223 = vmatprep.subr.bf16.mxu0 0
    %1224 = vmatpush1.bf16.msra.mxu0 0
    %1225 = vmatprep.subr.bf16.mxu0 0
    %1226 = vmatpush1.bf16.msra.mxu0 0
    %1227 = vmatprep.subr.bf16.mxu0 0
    %1228 = vmatpush1.bf16.msra.mxu0 0
    %1229 = vmatprep.subr.bf16.mxu0 0
    %1230 = vmatpush1.bf16.msra.mxu0 0
    %1231 = vmatprep.mubr.bf16.mxu0 0
    %1232 = vmatmul.mubr.bf16.gmra.mrb[0].mxu0 %v1197
    %v1233 = vpop.f32.mrb[0].mxu0
    %v1234 = vadd.f32 %v188, %v1233
    %v1235 = vpop.f32.mrb[0].mxu0
    %v1236 = vpop.f32.mrb[0].mxu0
    %v1237 = vpop.f32.mrb[0].mxu0
    %1238 = vdwg.mxu0
    %v1239 = vpack.c.bf16 %v1121, %v1121
    %1241 = vrot.lane.b32.xlu0 %v1239, 64
    %v1242 = vpop.permute.xlu0 %1241
    %v1244 = vsel %vm486, %v1242, 0
    %1246 = vmatprep.subr.bf16.mxu0 0
    %1247 = vmatpush1.bf16.msra.mxu0 %v482
    %1248 = vmatprep.subr.bf16.mxu0 0
    %1249 = vmatpush1.bf16.msra.mxu0 %v483
    %1250 = vmatprep.subr.bf16.mxu0 0
    %1251 = vmatpush1.bf16.msra.mxu0 0
    %1252 = vmatprep.subr.bf16.mxu0 0
    %1253 = vmatpush1.bf16.msra.mxu0 0
    %1254 = vmatprep.subr.bf16.mxu0 0
    %1255 = vmatpush1.bf16.msra.mxu0 0
    %1256 = vmatprep.subr.bf16.mxu0 0
    %1257 = vmatpush1.bf16.msra.mxu0 0
    %1258 = vmatprep.subr.bf16.mxu0 0
    %1259 = vmatpush1.bf16.msra.mxu0 0
    %1260 = vmatprep.subr.bf16.mxu0 0
    %1261 = vmatpush1.bf16.msra.mxu0 0
    %1262 = vmatprep.subr.bf16.mxu0 0
    %1263 = vmatpush1.bf16.msra.mxu0 0
    %1264 = vmatprep.subr.bf16.mxu0 0
    %1265 = vmatpush1.bf16.msra.mxu0 0
    %1266 = vmatprep.subr.bf16.mxu0 0
    %1267 = vmatpush1.bf16.msra.mxu0 0
    %1268 = vmatprep.subr.bf16.mxu0 0
    %1269 = vmatpush1.bf16.msra.mxu0 0
    %1270 = vmatprep.subr.bf16.mxu0 0
    %1271 = vmatpush1.bf16.msra.mxu0 0
    %1272 = vmatprep.subr.bf16.mxu0 0
    %1273 = vmatpush1.bf16.msra.mxu0 0
    %1274 = vmatprep.subr.bf16.mxu0 0
    %1275 = vmatpush1.bf16.msra.mxu0 0
    %1276 = vmatprep.subr.bf16.mxu0 0
    %1277 = vmatpush1.bf16.msra.mxu0 0
    %1278 = vmatprep.mubr.bf16.mxu0 0
    %1279 = vmatmul.mubr.bf16.gmra.mrb[0].mxu0 %v1244
    %v1280 = vpop.f32.mrb[0].mxu0
    %v1281 = vadd.f32 0.0, %v1280
    %v1282 = vpop.f32.mrb[0].mxu0
    %v1283 = vpop.f32.mrb[0].mxu0
    %v1284 = vpop.f32.mrb[0].mxu0
    %1285 = vdwg.mxu0
    %v1286 = vadd.f32 %v1234, %v1281
    %v1287 = vxor.u32 %v1286, 2147483648
    %v1288 = vmul.f32 %v1287, 1.442695
    %v1289 = vpow.pop %v1288
    %v1290 = vadd.f32 %v1289, 1.0
    %v1291 = vrcp.pop %v1290
    %v1292 = vmul.f32 1.0, %v1291
    %v1293 = vtanh.pop %v1286
    %v1294 = vmul.f32 %v1292, %v1115
    %1296 = vrot.lane.b32.xlu0 %v1293, 32
    %v1297 = vpop.permute.xlu0 %1296
    %v1299 = vmul.f32 %v1292, %v1297
    %1301 = vrot.lane.b32.xlu0 %v1299, 32
    %v1302 = vpop.permute.xlu0 %1301
    %v1304 = vadd.f32 %v1294, %v1302
    %v1305 = vtanh.pop %v1304
    %1307 = vrot.lane.b32.xlu0 %v1305, 32
    %v1308 = vpop.permute.xlu0 %1307
    %v1310 = vmul.f32 %v1292, %v1308
    %1311 = vmatprep.subr.bf16.mxu0 %v338
    %1312 = vmatpush1.bf16.msra.mxu0 %v337
    %1313 = vmatprep.subr.bf16.mxu0 %v340
    %1314 = vmatpush1.bf16.msra.mxu0 %v339
    %1315 = vmatprep.subr.bf16.mxu0 %v342
    %1316 = vmatpush1.bf16.msra.mxu0 %v341
    %1317 = vmatprep.subr.bf16.mxu0 %v344
    %1318 = vmatpush1.bf16.msra.mxu0 %v343
    %1319 = vmatprep.subr.bf16.mxu0 0
    %1320 = vmatpush1.bf16.msra.mxu0 0
    %1321 = vmatprep.subr.bf16.mxu0 0
    %1322 = vmatpush1.bf16.msra.mxu0 0
    %1323 = vmatprep.subr.bf16.mxu0 0
    %1324 = vmatpush1.bf16.msra.mxu0 0
    %1325 = vmatprep.subr.bf16.mxu0 0
    %1326 = vmatpush1.bf16.msra.mxu0 0
    %1327 = vmatprep.subr.bf16.mxu0 0
    %1328 = vmatpush1.bf16.msra.mxu0 0
    %1329 = vmatprep.subr.bf16.mxu0 0
    %1330 = vmatpush1.bf16.msra.mxu0 0
    %1331 = vmatprep.subr.bf16.mxu0 0
    %1332 = vmatpush1.bf16.msra.mxu0 0
    %1333 = vmatprep.subr.bf16.mxu0 0
    %1334 = vmatpush1.bf16.msra.mxu0 0
    %1335 = vmatprep.subr.bf16.mxu0 0
    %1336 = vmatpush1.bf16.msra.mxu0 0
    %1337 = vmatprep.subr.bf16.mxu0 0
    %1338 = vmatpush1.bf16.msra.mxu0 0
    %1339 = vmatprep.subr.bf16.mxu0 0
    %1340 = vmatpush1.bf16.msra.mxu0 0
    %1341 = vmatprep.subr.bf16.mxu0 0
    %1342 = vmatpush1.bf16.msra.mxu0 0
    %1343 = vmatprep.mubr.bf16.mxu0 0
    %1344 = vmatmul.mubr.bf16.gmra.mrb[0].mxu0 %v1197
    %v1345 = vpop.f32.mrb[0].mxu0
    %v1346 = vadd.f32 0.0, %v1345
    %v1347 = vpop.f32.mrb[0].mxu0
    %v1348 = vadd.f32 0.0, %v1347
    %v1349 = vpop.f32.mrb[0].mxu0
    %v1350 = vpop.f32.mrb[0].mxu0
    %1351 = vdwg.mxu0
    %v1352 = vadd.f32 %v179, %v1346
    %v1353 = vadd.f32 %v180, %v1348
    %v1354 = vxor.u32 %v1352, 2147483648
    %v1355 = vxor.u32 %v1353, 2147483648
    %v1356 = vmul.f32 %v1354, 1.442695
    %v1357 = vpow.pop %v1356
    %v1358 = vmul.f32 %v1355, 1.442695
    %v1359 = vpow.pop %v1358
    %v1360 = vadd.f32 %v1357, 1.0
    %v1361 = vadd.f32 %v1359, 1.0
    %v1362 = vrcp.pop %v1360
    %v1363 = vmul.f32 1.0, %v1362
    %v1364 = vrcp.pop %v1361
    %v1365 = vmul.f32 1.0, %v1364
    %v1366 = vtanh.pop %v1353
    %v1367 = vmul.f32 %v1363, %v1188
    %1369 = vrot.lane.b32.xlu0 %v1366, 64
    %v1370 = vpop.permute.xlu0 %1369
    %v1372 = vmul.f32 %v1363, %v1370
    %1374 = vrot.lane.b32.xlu0 %v1372, 64
    %v1375 = vpop.permute.xlu0 %1374
    %v1377 = vadd.f32 %v1367, %v1375
    %v1378 = vtanh.pop %v1377
    %1380 = vrot.lane.b32.xlu0 %v1378, 64
    %v1381 = vpop.permute.xlu0 %1380
    %v1383 = vmul.f32 %v1365, %v1381
    %v1384 = vpack.c.bf16 %v1383, %v1383
    %v1386 = vsel %vm245, %v1384, 0
    %1388 = vmatprep.subr.bf16.mxu0 0
    %1389 = vmatpush1.bf16.msra.mxu0 %v237
    %1390 = vmatprep.subr.bf16.mxu0 0
    %1391 = vmatpush1.bf16.msra.mxu0 %v238
    %1392 = vmatprep.subr.bf16.mxu0 0
    %1393 = vmatpush1.bf16.msra.mxu0 %v239
    %1394 = vmatprep.subr.bf16.mxu0 0
    %1395 = vmatpush1.bf16.msra.mxu0 %v240
    %1396 = vmatprep.subr.bf16.mxu0 0
    %1397 = vmatpush1.bf16.msra.mxu0 0
    %1398 = vmatprep.subr.bf16.mxu0 0
    %1399 = vmatpush1.bf16.msra.mxu0 0
    %1400 = vmatprep.subr.bf16.mxu0 0
    %1401 = vmatpush1.bf16.msra.mxu0 0
    %1402 = vmatprep.subr.bf16.mxu0 0
    %1403 = vmatpush1.bf16.msra.mxu0 0
    %1404 = vmatprep.subr.bf16.mxu0 0
    %1405 = vmatpush1.bf16.msra.mxu0 0
    %1406 = vmatprep.subr.bf16.mxu0 0
    %1407 = vmatpush1.bf16.msra.mxu0 0
    %1408 = vmatprep.subr.bf16.mxu0 0
    %1409 = vmatpush1.bf16.msra.mxu0 0
    %1410 = vmatprep.subr.bf16.mxu0 0
    %1411 = vmatpush1.bf16.msra.mxu0 0
    %1412 = vmatprep.subr.bf16.mxu0 0
    %1413 = vmatpush1.bf16.msra.mxu0 0
    %1414 = vmatprep.subr.bf16.mxu0 0
    %1415 = vmatpush1.bf16.msra.mxu0 0
    %1416 = vmatprep.subr.bf16.mxu0 0
    %1417 = vmatpush1.bf16.msra.mxu0 0
    %1418 = vmatprep.subr.bf16.mxu0 0
    %1419 = vmatpush1.bf16.msra.mxu0 0
    %1420 = vmatprep.mubr.bf16.mxu0 0
    %1421 = vmatmul.mubr.bf16.gmra.mrb[0].mxu0 %v1386
    %v1422 = vpop.f32.mrb[0].mxu0
    %v1423 = vadd.f32 %v188, %v1422
    %v1424 = vpop.f32.mrb[0].mxu0
    %v1425 = vpop.f32.mrb[0].mxu0
    %v1426 = vpop.f32.mrb[0].mxu0
    %1427 = vdwg.mxu0
    %v1428 = vpack.c.bf16 %v1310, %v1310
    %1430 = vrot.lane.b32.xlu0 %v1428, 64
    %v1431 = vpop.permute.xlu0 %1430
    %v1433 = vsel %vm486, %v1431, 0
    %1435 = vmatprep.subr.bf16.mxu0 0
    %1436 = vmatpush1.bf16.msra.mxu0 %v482
    %1437 = vmatprep.subr.bf16.mxu0 0
    %1438 = vmatpush1.bf16.msra.mxu0 %v483
    %1439 = vmatprep.subr.bf16.mxu0 0
    %1440 = vmatpush1.bf16.msra.mxu0 0
    %1441 = vmatprep.subr.bf16.mxu0 0
    %1442 = vmatpush1.bf16.msra.mxu0 0
    %1443 = vmatprep.subr.bf16.mxu0 0
    %1444 = vmatpush1.bf16.msra.mxu0 0
    %1445 = vmatprep.subr.bf16.mxu0 0
    %1446 = vmatpush1.bf16.msra.mxu0 0
    %1447 = vmatprep.subr.bf16.mxu0 0
    %1448 = vmatpush1.bf16.msra.mxu0 0
    %1449 = vmatprep.subr.bf16.mxu0 0
    %1450 = vmatpush1.bf16.msra.mxu0 0
    %1451 = vmatprep.subr.bf16.mxu0 0
    %1452 = vmatpush1.bf16.msra.mxu0 0
    %1453 = vmatprep.subr.bf16.mxu0 0
    %1454 = vmatpush1.bf16.msra.mxu0 0
    %1455 = vmatprep.subr.bf16.mxu0 0
    %1456 = vmatpush1.bf16.msra.mxu0 0
    %1457 = vmatprep.subr.bf16.mxu0 0
    %1458 = vmatpush1.bf16.msra.mxu0 0
    %1459 = vmatprep.subr.bf16.mxu0 0
    %1460 = vmatpush1.bf16.msra.mxu0 0
    %1461 = vmatprep.subr.bf16.mxu0 0
    %1462 = vmatpush1.bf16.msra.mxu0 0
    %1463 = vmatprep.subr.bf16.mxu0 0
    %1464 = vmatpush1.bf16.msra.mxu0 0
    %1465 = vmatprep.subr.bf16.mxu0 0
    %1466 = vmatpush1.bf16.msra.mxu0 0
    %1467 = vmatprep.mubr.bf16.mxu0 0
    %1468 = vmatmul.mubr.bf16.gmra.mrb[0].mxu0 %v1433
    %v1469 = vpop.f32.mrb[0].mxu0
    %v1470 = vadd.f32 0.0, %v1469
    %v1471 = vpop.f32.mrb[0].mxu0
    %v1472 = vpop.f32.mrb[0].mxu0
    %v1473 = vpop.f32.mrb[0].mxu0
    %1474 = vdwg.mxu0
    %v1475 = vadd.f32 %v1423, %v1470
    %v1476 = vxor.u32 %v1475, 2147483648
    %v1477 = vmul.f32 %v1476, 1.442695
    %v1478 = vpow.pop %v1477
    %v1479 = vadd.f32 %v1478, 1.0
    %v1480 = vrcp.pop %v1479
    %v1481 = vmul.f32 1.0, %v1480
    %v1482 = vtanh.pop %v1475
    %v1483 = vmul.f32 %v1481, %v1304
    %1485 = vrot.lane.b32.xlu0 %v1482, 32
    %v1486 = vpop.permute.xlu0 %1485
    %v1488 = vmul.f32 %v1481, %v1486
    %1490 = vrot.lane.b32.xlu0 %v1488, 32
    %v1491 = vpop.permute.xlu0 %1490
    %v1493 = vadd.f32 %v1483, %v1491
    %v1494 = vtanh.pop %v1493
    %1496 = vrot.lane.b32.xlu0 %v1494, 32
    %v1497 = vpop.permute.xlu0 %1496
    %v1499 = vmul.f32 %v1481, %v1497
    %1500 = vmatprep.subr.bf16.mxu0 %v338
    %1501 = vmatpush1.bf16.msra.mxu0 %v337
    %1502 = vmatprep.subr.bf16.mxu0 %v340
    %1503 = vmatpush1.bf16.msra.mxu0 %v339
    %1504 = vmatprep.subr.bf16.mxu0 %v342
    %1505 = vmatpush1.bf16.msra.mxu0 %v341
    %1506 = vmatprep.subr.bf16.mxu0 %v344
    %1507 = vmatpush1.bf16.msra.mxu0 %v343
    %1508 = vmatprep.subr.bf16.mxu0 0
    %1509 = vmatpush1.bf16.msra.mxu0 0
    %1510 = vmatprep.subr.bf16.mxu0 0
    %1511 = vmatpush1.bf16.msra.mxu0 0
    %1512 = vmatprep.subr.bf16.mxu0 0
    %1513 = vmatpush1.bf16.msra.mxu0 0
    %1514 = vmatprep.subr.bf16.mxu0 0
    %1515 = vmatpush1.bf16.msra.mxu0 0
    %1516 = vmatprep.subr.bf16.mxu0 0
    %1517 = vmatpush1.bf16.msra.mxu0 0
    %1518 = vmatprep.subr.bf16.mxu0 0
    %1519 = vmatpush1.bf16.msra.mxu0 0
    %1520 = vmatprep.subr.bf16.mxu0 0
    %1521 = vmatpush1.bf16.msra.mxu0 0
    %1522 = vmatprep.subr.bf16.mxu0 0
    %1523 = vmatpush1.bf16.msra.mxu0 0
    %1524 = vmatprep.subr.bf16.mxu0 0
    %1525 = vmatpush1.bf16.msra.mxu0 0
    %1526 = vmatprep.subr.bf16.mxu0 0
    %1527 = vmatpush1.bf16.msra.mxu0 0
    %1528 = vmatprep.subr.bf16.mxu0 0
    %1529 = vmatpush1.bf16.msra.mxu0 0
    %1530 = vmatprep.subr.bf16.mxu0 0
    %1531 = vmatpush1.bf16.msra.mxu0 0
    %1532 = vmatprep.mubr.bf16.mxu0 0
    %1533 = vmatmul.mubr.bf16.gmra.mrb[0].mxu0 %v1386
    %v1534 = vpop.f32.mrb[0].mxu0
    %v1535 = vadd.f32 0.0, %v1534
    %v1536 = vpop.f32.mrb[0].mxu0
    %v1537 = vadd.f32 0.0, %v1536
    %v1538 = vpop.f32.mrb[0].mxu0
    %v1539 = vpop.f32.mrb[0].mxu0
    %1540 = vdwg.mxu0
    %v1541 = vadd.f32 %v181, %v1535
    %v1542 = vadd.f32 %v182, %v1537
    %v1543 = vxor.u32 %v1541, 2147483648
    %v1544 = vxor.u32 %v1542, 2147483648
    %v1545 = vmul.f32 %v1543, 1.442695
    %v1546 = vpow.pop %v1545
    %v1547 = vmul.f32 %v1544, 1.442695
    %v1548 = vpow.pop %v1547
    %v1549 = vadd.f32 %v1546, 1.0
    %v1550 = vadd.f32 %v1548, 1.0
    %v1551 = vrcp.pop %v1549
    %v1552 = vmul.f32 1.0, %v1551
    %v1553 = vrcp.pop %v1550
    %v1554 = vmul.f32 1.0, %v1553
    %v1555 = vtanh.pop %v1542
    %v1556 = vmul.f32 %v1552, %v1377
    %1558 = vrot.lane.b32.xlu0 %v1555, 64
    %v1559 = vpop.permute.xlu0 %1558
    %v1561 = vmul.f32 %v1552, %v1559
    %1563 = vrot.lane.b32.xlu0 %v1561, 64
    %v1564 = vpop.permute.xlu0 %1563
    %v1566 = vadd.f32 %v1556, %v1564
    %v1567 = vtanh.pop %v1566
    %1569 = vrot.lane.b32.xlu0 %v1567, 64
    %v1570 = vpop.permute.xlu0 %1569
    %v1572 = vmul.f32 %v1554, %v1570
    %v1573 = vpack.c.bf16 %v1572, %v1572
    %v1575 = vsel %vm245, %v1573, 0
    %1577 = vmatprep.subr.bf16.mxu0 0
    %1578 = vmatpush1.bf16.msra.mxu0 %v237
    %1579 = vmatprep.subr.bf16.mxu0 0
    %1580 = vmatpush1.bf16.msra.mxu0 %v238
    %1581 = vmatprep.subr.bf16.mxu0 0
    %1582 = vmatpush1.bf16.msra.mxu0 %v239
    %1583 = vmatprep.subr.bf16.mxu0 0
    %1584 = vmatpush1.bf16.msra.mxu0 %v240
    %1585 = vmatprep.subr.bf16.mxu0 0
    %1586 = vmatpush1.bf16.msra.mxu0 0
    %1587 = vmatprep.subr.bf16.mxu0 0
    %1588 = vmatpush1.bf16.msra.mxu0 0
    %1589 = vmatprep.subr.bf16.mxu0 0
    %1590 = vmatpush1.bf16.msra.mxu0 0
    %1591 = vmatprep.subr.bf16.mxu0 0
    %1592 = vmatpush1.bf16.msra.mxu0 0
    %1593 = vmatprep.subr.bf16.mxu0 0
    %1594 = vmatpush1.bf16.msra.mxu0 0
    %1595 = vmatprep.subr.bf16.mxu0 0
    %1596 = vmatpush1.bf16.msra.mxu0 0
    %1597 = vmatprep.subr.bf16.mxu0 0
    %1598 = vmatpush1.bf16.msra.mxu0 0
    %1599 = vmatprep.subr.bf16.mxu0 0
    %1600 = vmatpush1.bf16.msra.mxu0 0
    %1601 = vmatprep.subr.bf16.mxu0 0
    %1602 = vmatpush1.bf16.msra.mxu0 0
    %1603 = vmatprep.subr.bf16.mxu0 0
    %1604 = vmatpush1.bf16.msra.mxu0 0
    %1605 = vmatprep.subr.bf16.mxu0 0
    %1606 = vmatpush1.bf16.msra.mxu0 0
    %1607 = vmatprep.subr.bf16.mxu0 0
    %1608 = vmatpush1.bf16.msra.mxu0 0
    %1609 = vmatprep.mubr.bf16.mxu0 0
    %1610 = vmatmul.mubr.bf16.gmra.mrb[0].mxu0 %v1575
    %v1611 = vpop.f32.mrb[0].mxu0
    %v1612 = vadd.f32 %v188, %v1611
    %v1613 = vpop.f32.mrb[0].mxu0
    %v1614 = vpop.f32.mrb[0].mxu0
    %v1615 = vpop.f32.mrb[0].mxu0
    %1616 = vdwg.mxu0
    %v1617 = vpack.c.bf16 %v1499, %v1499
    %1619 = vrot.lane.b32.xlu0 %v1617, 64
    %v1620 = vpop.permute.xlu0 %1619
    %v1622 = vsel %vm486, %v1620, 0
    %1624 = vmatprep.subr.bf16.mxu0 0
    %1625 = vmatpush1.bf16.msra.mxu0 %v482
    %1626 = vmatprep.subr.bf16.mxu0 0
    %1627 = vmatpush1.bf16.msra.mxu0 %v483
    %1628 = vmatprep.subr.bf16.mxu0 0
    %1629 = vmatpush1.bf16.msra.mxu0 0
    %1630 = vmatprep.subr.bf16.mxu0 0
    %1631 = vmatpush1.bf16.msra.mxu0 0
    %1632 = vmatprep.subr.bf16.mxu0 0
    %1633 = vmatpush1.bf16.msra.mxu0 0
    %1634 = vmatprep.subr.bf16.mxu0 0
    %1635 = vmatpush1.bf16.msra.mxu0 0
    %1636 = vmatprep.subr.bf16.mxu0 0
    %1637 = vmatpush1.bf16.msra.mxu0 0
    %1638 = vmatprep.subr.bf16.mxu0 0
    %1639 = vmatpush1.bf16.msra.mxu0 0
    %1640 = vmatprep.subr.bf16.mxu0 0
    %1641 = vmatpush1.bf16.msra.mxu0 0
    %1642 = vmatprep.subr.bf16.mxu0 0
    %1643 = vmatpush1.bf16.msra.mxu0 0
    %1644 = vmatprep.subr.bf16.mxu0 0
    %1645 = vmatpush1.bf16.msra.mxu0 0
    %1646 = vmatprep.subr.bf16.mxu0 0
    %1647 = vmatpush1.bf16.msra.mxu0 0
    %1648 = vmatprep.subr.bf16.mxu0 0
    %1649 = vmatpush1.bf16.msra.mxu0 0
    %1650 = vmatprep.subr.bf16.mxu0 0
    %1651 = vmatpush1.bf16.msra.mxu0 0
    %1652 = vmatprep.subr.bf16.mxu0 0
    %1653 = vmatpush1.bf16.msra.mxu0 0
    %1654 = vmatprep.subr.bf16.mxu0 0
    %1655 = vmatpush1.bf16.msra.mxu0 0
    %1656 = vmatprep.mubr.bf16.mxu0 0
    %1657 = vmatmul.mubr.bf16.gmra.mrb[0].mxu0 %v1622
    %v1658 = vpop.f32.mrb[0].mxu0
    %v1659 = vadd.f32 0.0, %v1658
    %v1660 = vpop.f32.mrb[0].mxu0
    %v1661 = vpop.f32.mrb[0].mxu0
    %v1662 = vpop.f32.mrb[0].mxu0
    %1663 = vdwg.mxu0
    %v1664 = vadd.f32 %v1612, %v1659
    %v1665 = vxor.u32 %v1664, 2147483648
    %v1666 = vmul.f32 %v1665, 1.442695
    %v1667 = vpow.pop %v1666
    %v1668 = vadd.f32 %v1667, 1.0
    %v1669 = vrcp.pop %v1668
    %v1670 = vmul.f32 1.0, %v1669
    %v1671 = vtanh.pop %v1664
    %v1672 = vmul.f32 %v1670, %v1493
    %1674 = vrot.lane.b32.xlu0 %v1671, 32
    %v1675 = vpop.permute.xlu0 %1674
    %v1677 = vmul.f32 %v1670, %v1675
    %1679 = vrot.lane.b32.xlu0 %v1677, 32
    %v1680 = vpop.permute.xlu0 %1679
    %v1682 = vadd.f32 %v1672, %v1680
    %v1683 = vtanh.pop %v1682
    %1685 = vrot.lane.b32.xlu0 %v1683, 32
    %v1686 = vpop.permute.xlu0 %1685
    %v1688 = vmul.f32 %v1670, %v1686
    %v1689 = vld [vmem:[#allocation5] sm:$0x1]
    %v1691 = vlaneseq
    %v1692 = vshrl.u32 %v1691, 7
    %v1693 = vsub.s32 0, %v1692
    %v1694 = vrot.slane %v1689, %v1693
    %1695 = vrot.lane.b32.xlu0 %v1694, 64
    %v1696 = vpop.permute.xlu0 %1695
    %v1698 = vmul.f32 %v1688, %v1696
    %1700 = vrot.lane.b32.xlu0 %v1698, 64
    %v1701 = vpop.permute.xlu0 %1700
    %v1703 = vsel %vm486, %v1701, 0.0
    %1704 = vadd.xlane.f32.xlu0 %v1703
    %v1705 = vpop.xlane.xlu0 %1704
    %v1706 = vld [vmem:[#allocation2] sm:$0x1]
    %v1708 = vlaneseq
    %v1709 = vshrl.u32 %v1708, 7
    %v1710 = vsub.s32 0, %v1709
    %v1711 = vrot.slane %v1706, %v1710
    %v1713 = vadd.f32 %v1705, %v1711
    %v1714 = vxor.u32 %v1713, 2147483648
    %v1715 = vmul.f32 %v1714, 1.442695
    %v1716 = vpow.pop %v1715
    %v1717 = vadd.f32 %v1716, 1.0
    %v1718 = vrcp.pop %v1717
    %v1719 = vmul.f32 1.0, %v1718
    %vm1720 = vcmask 7168
    %1721 = vst.msk [vmem:[%s9] sm:$0xff] %vm1720, %v1719
    // Predicated region
    $region46: #{lstm_classifier_forward.1} parent=1 // pred_check
      _
    $region47: #{lstm_classifier_forward.1} parent=1 // pred_check_branch
      %1723 = sbr.rel (0) target = $region49
    $region48: #{lstm_classifier_forward.1} parent=1 // pred_region
      _
    $region49: #{lstm_classifier_forward.1} parent=1 // pred_fallthru
      _
    // Predicated region
    $region50: #{lstm_classifier_forward.1} parent=1 // pred_check
      _
    $region51: #{lstm_classifier_forward.1} parent=1 // pred_check_branch
      %1725 = sbr.rel (0) target = $region53
    $region52: #{lstm_classifier_forward.1} parent=1 // pred_region
      _
    $region53: #{lstm_classifier_forward.1} parent=1 // pred_fallthru
      _
    %1726 = vsyncpa [#allocation4], 1
    %1727 = vsyncpa [#allocation6], 1

</llo_original>
